<compile_context>
chip_gen: v7x
topology: tpu7x:2x2x1
jax: 0.10.0
libtpu: 0.0.40
codegen_flags: <defaults>
</compile_context>

<pallas_src>
import math

import jax
import jax.numpy as jnp
from jax.experimental import pallas as pl
from jax.experimental.pallas import tpu as pltpu


def cnn1d_config(input_features):
    """Mirror the arithmetic in CNN_1D.__init__ / get_final_size."""
    K = math.floor(input_features / 9)                    # Conv3d kernel (depth)
    if K < 1:
        raise ValueError("input_features must be >= 9 (Conv3d kernel size would be 0)")
    P = math.ceil((input_features - K + 1) / 30)          # MaxPool3d size (depth)
    if P == 0:
        P = 1
    DC = input_features - K + 1                           # depth after conv
    DP = DC // P                                          # depth after maxpool (floor)
    OC = 20                                               # conv out channels
    FS = OC * DP                                          # channels into the 1x1 convs
    return K, P, DC, DP, OC, FS


def _default_act_dtype():
    """bf16 elementwise/tanh only where the VPU/EUP support it (v6e / v7x)."""
    try:
        kind = jax.devices()[0].device_kind.lower()
    except Exception:
        return jnp.float32
    if "v6" in kind or "v7" in kind or "7x" in kind:
        return jnp.bfloat16
    return jnp.float32


def _const_spec(shape):
    """BlockSpec for a grid-invariant operand (single-buffered when supported)."""
    nd = len(shape)
    index_map = lambda bi, j: (0,) * nd
    if hasattr(pl, "Buffered"):
        try:
            return pl.BlockSpec(shape, index_map, pipeline_mode=pl.Buffered(1))
        except Exception:  # older API without pipeline_mode -> plain (double-buffered)
            pass
    return pl.BlockSpec(shape, index_map)


def _choose_tile_px(hw, batch, cap=2048, min_steps=4):
    """Pixel-tile width (lane dim) and padded pixel count per image."""
    if hw <= 256:
        return hw, hw                                     # one full-width block / image
    hwp = -(-hw // 128) * 128                             # pad pixels to lane multiple
    t = min(cap, hwp)
    t -= t % 128
    while hwp % t:
        t -= 128
    # keep >= min_steps grid steps so v7x's two TensorCores each pipeline >= 2 tiles
    while t > 128 and batch * (hwp // t) < min_steps:
        nt = t - 128
        while hwp % nt:
            nt -= 128
        t = nt
    return t, hwp


def _vmem_limit_bytes(F, FSp, H1p, NC, P, tpx):
    blk = (2 * F * tpx * 4                                   # f32 x tile, double-buffered
           + 2 * NC * tpx * 4                                # f32 out tile, double-buffered
           + 2 * (P * FSp * F + FSp * H1p + NC * H1p) * 2    # bf16 weights (allow 2x)
           + (3 * FSp + 3 * H1p + 2 * NC + F) * tpx * 4)     # live intermediates
    return int(min(max(2 * blk, 32 << 20), 64 << 20))        # stay inside v7x 64 MiB


def build_conv_weights(wc, bc, F, P, DP, FSp, compute_dtype):
    """Banded/im2col Conv3d weight as (P, FSp, F) plus a per-channel bias column.

    Row c = o*DP + d of slab p holds the K taps of output channel o at depth
    position d*P + p (zero outside [0, K)); depth positions >= DP*P are dropped,
    matching MaxPool3d's floor behaviour.  Rows c >= OC*DP are zero padding.
    """
    OC, K = wc.shape
    FS = OC * DP
    pos = jnp.arange(DP)[None, :] * P + jnp.arange(P)[:, None]        # (P, DP)
    k = jnp.arange(F)[None, None, :] - pos[:, :, None]                # (P, DP, F)
    valid = (k >= 0) & (k < K)
    kc = jnp.clip(k, 0, K - 1)
    w = jnp.where(valid[None], wc[:, kc], 0.0)                        # (OC, P, DP, F)
    w = jnp.transpose(w, (1, 0, 2, 3)).reshape(P, FS, F)              # row c = o*DP + d
    w = jnp.pad(w, ((0, 0), (0, FSp - FS), (0, 0)))
    bcol = jnp.pad(jnp.repeat(bc, DP), (0, FSp - FS)).reshape(FSp, 1)
    return w.astype(compute_dtype), bcol.astype(jnp.float32)


def _make_kernel(P, act_dtype, mxu_dtype):
    def kernel(x_ref, wconv_ref, bconv_ref, w1_ref, b1_ref, w2_ref, b2_ref, o_ref):
        x = x_ref[0].astype(mxu_dtype)                                # (F, Tpx) bf16
        # Conv3d as P banded matmuls; MaxPool3d fused as a running max over the
        # P depth-phase slabs (only one extra (FSp, Tpx) f32 slab live at a time).
        acc = jnp.dot(wconv_ref[0], x, preferred_element_type=jnp.float32)
        for p in range(1, P):
            acc = jnp.maximum(
                acc, jnp.dot(wconv_ref[p], x, preferred_element_type=jnp.float32))
        # Bias + tanh AFTER the pool (exact: tanh monotone, bias equal across slabs).
        h = jnp.tanh((acc + bconv_ref[...]).astype(act_dtype))        # (FSp, Tpx)
        # final_conv_1 (1x1 conv == per-pixel matmul) + tanh
        h1 = jnp.dot(w1_ref[...], h.astype(mxu_dtype),
                     preferred_element_type=jnp.float32) + b1_ref[...]
        h1 = jnp.tanh(h1.astype(act_dtype))                           # (H1p, Tpx)
        # final_conv_2 (1x1 conv)
        out = jnp.dot(w2_ref[...], h1.astype(mxu_dtype),
                      preferred_element_type=jnp.float32) + b2_ref[...]
        o_ref[0] = out.astype(o_ref.dtype)                            # (NC, Tpx) lane-dense

    return kernel


def cnn_1d_forward(x, params, *, tile_px=2048, compute_dtype=jnp.bfloat16,
                   act_dtype=None):
    """x: (B, 1, F, H, W) float32  ->  (B, n_classes, H, W) float32."""
    wc, bc, w1t, b1, w2t, b2 = params
    B, Cin, F, H, W = x.shape
    assert Cin == 1
    OC, K = wc.shape
    _, P, DC, DP, _, FS = cnn1d_config(F)
    assert w1t.shape[0] == FS
    H1 = w1t.shape[1]
    NC = w2t.shape[1]
    FSp = -(-FS // 8) * 8                      # pad channel axis to 8 sublanes
    H1p = -(-H1 // 128) * 128                  # pad hidden width (100 -> 128), zero rows
    if act_dtype is None:
        act_dtype = _default_act_dtype()

    # MXU-friendly weights: banded conv weight (P, FSp, F); 1x1 convs as (out, in)
    # with zero padding; biases stay f32 columns for the f32 accumulate.
    wconv, bconv = build_conv_weights(wc, bc, F, P, DP, FSp, compute_dtype)
    w1f = jnp.zeros((H1p, FSp), compute_dtype).at[:H1, :FS].set(
        w1t.T.astype(compute_dtype))
    b1c = jnp.zeros((H1p, 1), jnp.float32).at[:H1, 0].set(
        b1.reshape(-1).astype(jnp.float32))
    w2f = jnp.zeros((NC, H1p), compute_dtype).at[:, :H1].set(
        w2t.T.astype(compute_dtype))
    b2c = b2.reshape(NC, 1).astype(jnp.float32)

    # Pixels-on-lanes: (B,1,F,H,W) -> (B, F, H*W) is a free reshape (no HBM transpose).
    hw = H * W
    tpx, hwp = _choose_tile_px(hw, B, cap=max(128, tile_px))
    x3 = x[:, 0].reshape(B, F, hw)
    if hwp != hw:
        # TODO(synk): padded pixels are wasted work; only hit when H*W is not a
        # multiple of 128 and larger than one tile.
        x3 = jnp.pad(x3, ((0, 0), (0, 0), (0, hwp - hw)))
    grid = (B, hwp // tpx)

    n_px = B * hwp
    cost = pl.CostEstimate(
        flops=2 * n_px * (P * FSp * F + FSp * H1p + H1p * NC),
        transcendentals=n_px * (FSp + H1p),                 # post-pool tanh count
        bytes_accessed=n_px * (F + NC) * 4
        + 2 * (P * FSp * F + FSp * H1p + NC * H1p)
        + 4 * (FSp + H1p + NC),
    )

    kernel = _make_kernel(P, act_dtype, compute_dtype)
    out3 = pl.pallas_call(
        kernel,
        out_shape=jax.ShapeDtypeStruct((B, NC, hwp), jnp.float32),
        grid_spec=pltpu.PrefetchScalarGridSpec(
            num_scalar_prefetch=0,
            grid=grid,
            in_specs=[
                pl.BlockSpec((1, F, tpx), lambda bi, j: (bi, 0, j)),  # x pixel slab
                _const_spec((P, FSp, F)),   # banded conv weight (bf16, single-buffered)
                _const_spec((FSp, 1)),      # conv bias column (f32)
                _const_spec((H1p, FSp)),    # final_conv_1 weight
                _const_spec((H1p, 1)),      # final_conv_1 bias
                _const_spec((NC, H1p)),     # final_conv_2 weight
                _const_spec((NC, 1)),       # final_conv_2 bias
            ],
            out_specs=pl.BlockSpec((1, NC, tpx), lambda bi, j: (bi, 0, j)),
        ),
        compiler_params=pltpu.CompilerParams(
            dimension_semantics=("parallel", "parallel"),
            vmem_limit_bytes=_vmem_limit_bytes(F, FSp, H1p, NC, P, tpx)),
        cost_estimate=cost,
    )(x3, wconv, bconv, w1f, b1c, w2f, b2c)

    return out3[:, :, :hw].reshape(B, NC, H, W)             # already (B, n_classes, H, W)


def reference_forward(x, params):
    """Plain-JAX reference with identical semantics (sanity check)."""
    wc, bc, w1t, b1, w2t, b2 = params
    B, _, F, H, W = x.shape
    OC, K = wc.shape
    _, P, DC, DP, _, FS = cnn1d_config(F)
    xs = x[:, 0]                                            # (B, F, H, W)
    conv = jnp.stack(
        [sum(wc[o, k] * xs[:, k:k + DC] for k in range(K)) + bc[o] for o in range(OC)],
        axis=1,
    )                                                       # (B, OC, DC, H, W)
    conv = jnp.tanh(conv)
    pooled = conv[:, :, :DP * P].reshape(B, OC, DP, P, H, W).max(axis=3)
    flat = pooled.reshape(B, OC * DP, H, W)                 # == torch .view ordering
    h1 = jnp.tanh(jnp.einsum("bfhw,fj->bjhw", flat, w1t) + b1.reshape(1, -1, 1, 1))
    return jnp.einsum("bfhw,fj->bjhw", h1, w2t) + b2.reshape(1, -1, 1, 1)


def make_params(key, F, n_classes, H1=100):
    K, P, DC, DP, OC, FS = cnn1d_config(F)
    ks = jax.random.split(key, 6)

    def u(k, shape, fan_in):
        bound = 1.0 / math.sqrt(fan_in)
        return jax.random.uniform(k, shape, jnp.float32, -bound, bound)

    wc = u(ks[0], (OC, K), K)                 # Conv3d weight (20,1,K,1,1) squeezed
    bc = u(ks[1], (OC,), K)                   # Conv3d bias
    w1t = u(ks[2], (FS, H1), FS)              # final_conv_1 weight transposed (FS, 100)
    b1 = u(ks[3], (1, H1), FS)                # final_conv_1 bias
    w2t = u(ks[4], (H1, n_classes), H1)       # final_conv_2 weight transposed
    b2 = u(ks[5], (1, n_classes), H1)         # final_conv_2 bias
    return (wc, bc, w1t, b1, w2t, b2)


if __name__ == "__main__":
    key = jax.random.PRNGKey(0)
    fwd = jax.jit(cnn_1d_forward)
    configs = [
        dict(F=20, n_classes=5, B=2, H=8, W=8),   # K=2, P=1  (pool is identity)
        dict(F=50, n_classes=5, B=1, H=8, W=8),   # K=5, P=2  (exercises the pool path)
    ]
    for cfg in configs:
        key, kp, kx = jax.random.split(key, 3)
        params = make_params(kp, cfg["F"], cfg["n_classes"])
        x = jax.random.normal(
            kx, (cfg["B"], 1, cfg["F"], cfg["H"], cfg["W"]), jnp.float32)
        out = jax.block_until_ready(fwd(x, params))
        ref = reference_forward(x, params)
        assert out.shape == (cfg["B"], cfg["n_classes"], cfg["H"], cfg["W"]), out.shape
        max_err = float(jnp.max(jnp.abs(out - ref)))
        assert jnp.allclose(out, ref, atol=5e-2, rtol=5e-2), max_err
    print("KERNEL_OK")
</pallas_src>

<mosaic_0001>
module attributes {stable_mosaic.version = 11 : i64} {
  func.func @kernel(%arg0: i32, %arg1: i32, %arg2: memref<1x20x64xf32, #tpu.memory_space<vmem>>, %arg3: memref<1x384x20xbf16, #tpu.memory_space<vmem>>, %arg4: memref<384x1xf32, #tpu.memory_space<vmem>>, %arg5: memref<128x384xbf16, #tpu.memory_space<vmem>>, %arg6: memref<128x1xf32, #tpu.memory_space<vmem>>, %arg7: memref<5x128xbf16, #tpu.memory_space<vmem>>, %arg8: memref<5x1xf32, #tpu.memory_space<vmem>>, %arg9: memref<1x5x64xf32, #tpu.memory_space<vmem>>) attributes {dimension_semantics = [#tpu.dimension_semantics<parallel>, #tpu.dimension_semantics<parallel>], iteration_bounds = array<i64: 2, 1>, scalar_prefetch = 0 : i64, scratch_operands = 0 : i64, tpu.core_type = #tpu.core_type<tc>, window_params = [{transform_indices = @transform_0, window_bounds = array<i64: 1, 20, 64>}, {pipeline_mode = #tpu.pipeline_mode<synchronous>, transform_indices = @transform_1, window_bounds = array<i64: 1, 384, 20>}, {pipeline_mode = #tpu.pipeline_mode<synchronous>, transform_indices = @transform_2, window_bounds = array<i64: 384, 1>}, {pipeline_mode = #tpu.pipeline_mode<synchronous>, transform_indices = @transform_3, window_bounds = array<i64: 128, 384>}, {pipeline_mode = #tpu.pipeline_mode<synchronous>, transform_indices = @transform_4, window_bounds = array<i64: 128, 1>}, {pipeline_mode = #tpu.pipeline_mode<synchronous>, transform_indices = @transform_5, window_bounds = array<i64: 5, 128>}, {pipeline_mode = #tpu.pipeline_mode<synchronous>, transform_indices = @transform_6, window_bounds = array<i64: 5, 1>}, {transform_indices = @transform_7, window_bounds = array<i64: 1, 5, 64>}]} {
    %c0 = arith.constant 0 : index
    %c0_0 = arith.constant 0 : index
    %c0_1 = arith.constant 0 : index
    %0 = vector.load %arg2[%c0, %c0_0, %c0_1] : memref<1x20x64xf32, #tpu.memory_space<vmem>>, vector<1x20x64xf32>
    %1 = vector.shape_cast %0 : vector<1x20x64xf32> to vector<20x64xf32>
    %2 = arith.truncf %1 : vector<20x64xf32> to vector<20x64xbf16>
    %c0_2 = arith.constant 0 : index
    %c0_3 = arith.constant 0 : index
    %c0_4 = arith.constant 0 : index
    %3 = vector.load %arg3[%c0_2, %c0_3, %c0_4] : memref<1x384x20xbf16, #tpu.memory_space<vmem>>, vector<1x384x20xbf16>
    %4 = vector.shape_cast %3 : vector<1x384x20xbf16> to vector<384x20xbf16>
    %cst = arith.constant dense<0.000000e+00> : vector<384x64xf32>
    %5 = tpu.matmul %4, %2, %cst {dimension_numbers = #tpu.dot_dimension_numbers<[1], [0], [0], [1], [0, 0, 1, 1], [], []>} : vector<384x20xbf16>, vector<20x64xbf16>, vector<384x64xf32> -> vector<384x64xf32>
    %c0_5 = arith.constant 0 : index
    %c0_6 = arith.constant 0 : index
    %6 = vector.load %arg4[%c0_5, %c0_6] : memref<384x1xf32, #tpu.memory_space<vmem>>, vector<384x1xf32>
    %7 = vector.broadcast %6 : vector<384x1xf32> to vector<384x64xf32>
    %8 = arith.addf %5, %7 : vector<384x64xf32>
    %9 = math.tanh %8 : vector<384x64xf32>
    %c0_7 = arith.constant 0 : index
    %c0_8 = arith.constant 0 : index
    %10 = vector.load %arg5[%c0_7, %c0_8] : memref<128x384xbf16, #tpu.memory_space<vmem>>, vector<128x384xbf16>
    %11 = arith.truncf %9 : vector<384x64xf32> to vector<384x64xbf16>
    %cst_9 = arith.constant dense<0.000000e+00> : vector<128x64xf32>
    %12 = tpu.matmul %10, %11, %cst_9 {dimension_numbers = #tpu.dot_dimension_numbers<[1], [0], [0], [1], [0, 0, 1, 1], [], []>} : vector<128x384xbf16>, vector<384x64xbf16>, vector<128x64xf32> -> vector<128x64xf32>
    %c0_10 = arith.constant 0 : index
    %c0_11 = arith.constant 0 : index
    %13 = vector.load %arg6[%c0_10, %c0_11] : memref<128x1xf32, #tpu.memory_space<vmem>>, vector<128x1xf32>
    %14 = vector.broadcast %13 : vector<128x1xf32> to vector<128x64xf32>
    %15 = arith.addf %12, %14 : vector<128x64xf32>
    %16 = math.tanh %15 : vector<128x64xf32>
    %c0_12 = arith.constant 0 : index
    %c0_13 = arith.constant 0 : index
    %17 = vector.load %arg7[%c0_12, %c0_13] : memref<5x128xbf16, #tpu.memory_space<vmem>>, vector<5x128xbf16>
    %18 = arith.truncf %16 : vector<128x64xf32> to vector<128x64xbf16>
    %cst_14 = arith.constant dense<0.000000e+00> : vector<5x64xf32>
    %19 = tpu.matmul %17, %18, %cst_14 {dimension_numbers = #tpu.dot_dimension_numbers<[1], [0], [0], [1], [0, 0, 1, 1], [], []>} : vector<5x128xbf16>, vector<128x64xbf16>, vector<5x64xf32> -> vector<5x64xf32>
    %c0_15 = arith.constant 0 : index
    %c0_16 = arith.constant 0 : index
    %20 = vector.load %arg8[%c0_15, %c0_16] : memref<5x1xf32, #tpu.memory_space<vmem>>, vector<5x1xf32>
    %21 = vector.broadcast %20 : vector<5x1xf32> to vector<5x64xf32>
    %22 = arith.addf %19, %21 : vector<5x64xf32>
    %c0_17 = arith.constant 0 : index
    %c0_18 = arith.constant 0 : index
    %c0_19 = arith.constant 0 : index
    %23 = vector.load %arg9[%c0_17, %c0_18, %c0_19] : memref<1x5x64xf32, #tpu.memory_space<vmem>>, vector<1x5x64xf32>
    %24 = vector.shape_cast %23 : vector<1x5x64xf32> to vector<5x64xf32>
    %25 = vector.shape_cast %22 : vector<5x64xf32> to vector<1x5x64xf32>
    tpu.vector_store %arg9[%c0_17, %c0_18, %c0_19], %25 {strides = array<i32>} : memref<1x5x64xf32, #tpu.memory_space<vmem>>, vector<1x5x64xf32>,
    return
  }
  func.func @transform_0(%arg0: i32, %arg1: i32) -> (i32, i32, i32) {
    %c0_i32 = arith.constant 0 : i32
    %c0_i32_0 = arith.constant 0 : i32
    return %arg0, %c0_i32, %arg1 : i32, i32, i32
  }
  func.func @transform_1(%arg0: i32, %arg1: i32) -> (i32, i32, i32) {
    %c0_i32 = arith.constant 0 : i32
    %c0_i32_0 = arith.constant 0 : i32
    %c0_i32_1 = arith.constant 0 : i32
    %c0_i32_2 = arith.constant 0 : i32
    return %c0_i32, %c0_i32_0, %c0_i32_1 : i32, i32, i32
  }
  func.func @transform_2(%arg0: i32, %arg1: i32) -> (i32, i32) {
    %c0_i32 = arith.constant 0 : i32
    %c0_i32_0 = arith.constant 0 : i32
    %c0_i32_1 = arith.constant 0 : i32
    return %c0_i32, %c0_i32_0 : i32, i32
  }
  func.func @transform_3(%arg0: i32, %arg1: i32) -> (i32, i32) {
    %c0_i32 = arith.constant 0 : i32
    %c0_i32_0 = arith.constant 0 : i32
    %c0_i32_1 = arith.constant 0 : i32
    return %c0_i32, %c0_i32_0 : i32, i32
  }
  func.func @transform_4(%arg0: i32, %arg1: i32) -> (i32, i32) {
    %c0_i32 = arith.constant 0 : i32
    %c0_i32_0 = arith.constant 0 : i32
    %c0_i32_1 = arith.constant 0 : i32
    return %c0_i32, %c0_i32_0 : i32, i32
  }
  func.func @transform_5(%arg0: i32, %arg1: i32) -> (i32, i32) {
    %c0_i32 = arith.constant 0 : i32
    %c0_i32_0 = arith.constant 0 : i32
    %c0_i32_1 = arith.constant 0 : i32
    return %c0_i32, %c0_i32_0 : i32, i32
  }
  func.func @transform_6(%arg0: i32, %arg1: i32) -> (i32, i32) {
    %c0_i32 = arith.constant 0 : i32
    %c0_i32_0 = arith.constant 0 : i32
    %c0_i32_1 = arith.constant 0 : i32
    return %c0_i32, %c0_i32_0 : i32, i32
  }
  func.func @transform_7(%arg0: i32, %arg1: i32) -> (i32, i32, i32) {
    %c0_i32 = arith.constant 0 : i32
    %c0_i32_0 = arith.constant 0 : i32
    return %arg0, %c0_i32, %arg1 : i32, i32, i32
  }
}

</mosaic_0001>

<llo_original>
// kernel: cnn_1d_forward.1
$region0: #{cnn_1d_forward.1}
  #allocation0 [shape = 'u32[]', space=smem, size = 0x4, offset = 0x4, fixed_abs, tag = 'smem constant byte address 0x4 - core index']
  #allocation1 [shape = 'u32[144,128]{1,0:T(1,128)}', space=vmem, size = 0x12000, scoped, tag = 'internal scratch']
  %s0 = inlined_call_operand.vmem [shape: f32[2,20,64], index: 0, kind: input, shape index: {}]
  %s1 = inlined_call_operand.vmem [shape: bf16[1,384,20], index: 1, kind: input, shape index: {}]
  %s2 = inlined_call_operand.vmem [shape: f32[384,1], index: 2, kind: input, shape index: {}]
  %s3 = inlined_call_operand.vmem [shape: bf16[128,384], index: 3, kind: input, shape index: {}]
  %s4 = inlined_call_operand.vmem [shape: f32[128,1], index: 4, kind: input, shape index: {}]
  %s5 = inlined_call_operand.vmem [shape: bf16[5,128], index: 5, kind: input, shape index: {}]
  %s6 = inlined_call_operand.vmem [shape: f32[5,1], index: 6, kind: input, shape index: {}]
  %s7 = inlined_call_operand.vmem [shape: f32[2,5,64], index: 7, kind: output, shape index: {}]
  %s8 = sld [smem:[#allocation0]]
  $region61: #{cnn_1d_forward.1} parent=0
    _
  %s10 = ssub.s32 1, %s8
  %s11 = scalar_select 0, %s10, %s8
  loop: start=0, step=1, limit=4
  $region2: #{cnn_1d_forward.1} parent=0 // loop_pre_header
    _
  $region3: #{cnn_1d_forward.1} parent=0 // loop_header
    %s13 = sphi 0, %s17
    %p14 = scmp.ge.s32.totalorder %s13, 4
    %s20 = sphi 0, %s32
    %s21 = sphi 0, %s28
    %s22 = sphi 0, %s20
    %s23 = sphi 0, %s21
    %s24 = sphi 0, %s22
    %s25 = sphi 0, %s23
    %s37 = sphi 0, %s39
    %s40 = sphi 0, %s37
    %s41 = sphi 0, %s40
    %s57 = sphi 0, %s41
    %s61 = sphi 0, %s61
    %s63 = sphi 0, %s61
    %s64 = sphi 0, %s63
    %s78 = sphi 0, %s64
    %s82 = sphi 0, %s82
    %s84 = sphi 0, %s82
    %s85 = sphi 0, %s84
    %s99 = sphi 0, %s85
    %s103 = sphi 0, %s103
    %s105 = sphi 0, %s103
    %s106 = sphi 0, %s105
    %s120 = sphi 0, %s106
    %s124 = sphi 0, %s124
    %s126 = sphi 0, %s124
    %s127 = sphi 0, %s126
    %s141 = sphi 0, %s127
    %s145 = sphi 0, %s145
    %s147 = sphi 0, %s145
    %s148 = sphi 0, %s147
    %s162 = sphi 0, %s148
    %s166 = sphi 0, %s166
    %s168 = sphi 0, %s166
    %s169 = sphi 0, %s168
    %s183 = sphi 0, %s169
    %s191 = sphi 0, %s193
    %s194 = sphi 0, %s191
    %s195 = sphi 0, %s194
    %s211 = sphi 0, %s195
  $region4: #{cnn_1d_forward.1} parent=0 // loop_header_branch
    %16 = sbr.rel (%p14) target = $region8
  $region5: #{cnn_1d_forward.1} parent=0 // loop_body
    %s18 = ssub.s32 %s13, 1
    %s19 = ssub.s32 %s13, 2
    %s26 = sadd.s32 1, %s21
    %p27 = scmp.ge.s32.totalorder %s26, 1
    %s28 = scalar_select %p27, 0, %s26
    %s29 = sadd.s32 1, %s20
    %s30 = scalar_select %p27, %s29, %s20
    %p31 = scmp.ge.s32.totalorder %s30, 2
    %s32 = scalar_select %p31, 0, %s30
    %s33 = ssub.s32 %s20, %s32
    %s34 = ssub.s32 %s21, %s28
    %s35 = sor.u32 %s33, %s34
    %p36 = scmp.eq.s32.totalorder %s35, 0
    %s38 = sadd.s32 %s37, 1
    %s39 = scalar_select %p36, %s37, %s38
    %p42 = pneg %p36
    %p43 = scmp.eq.s32.totalorder %s13, 1
    %p44 = por %p42, %p43
    %p45 = scmp.ne.s32.totalorder %s37, %s40
    %p46 = scmp.eq.s32.totalorder %s13, 0
    %p47 = por %p45, %p46
    %p48 = scmp.ne.s32.totalorder %s37, %s40
    %p49 = scmp.eq.s32.totalorder %s18, 1
    %p50 = por %p48, %p49
    %p51 = scmp.ne.s32.totalorder %s40, %s41
    %p52 = scmp.eq.s32.totalorder %s18, 0
    %p53 = por %p51, %p52
    %p54 = scmp.ne.s32.totalorder %s40, %s41
    %p55 = scmp.eq.s32.totalorder %s19, 1
    %p56 = por %p54, %p55
    %p58 = scmp.ne.s32.totalorder %s41, %s57
    %p59 = scmp.eq.s32.totalorder %s19, 0
    %p60 = por %p58, %p59
    %s62 = sadd.s32 %s61, 1
    %p65 = scmp.eq.s32.totalorder %s13, 1
    %p66 = scmp.ne.s32.totalorder %s61, %s63
    %p67 = scmp.eq.s32.totalorder %s13, 0
    %p68 = por %p66, %p67
    %p69 = scmp.ne.s32.totalorder %s61, %s63
    %p70 = scmp.eq.s32.totalorder %s18, 1
    %p71 = por %p69, %p70
    %p72 = scmp.ne.s32.totalorder %s63, %s64
    %p73 = scmp.eq.s32.totalorder %s18, 0
    %p74 = por %p72, %p73
    %p75 = scmp.ne.s32.totalorder %s63, %s64
    %p76 = scmp.eq.s32.totalorder %s19, 1
    %p77 = por %p75, %p76
    %p79 = scmp.ne.s32.totalorder %s64, %s78
    %p80 = scmp.eq.s32.totalorder %s19, 0
    %p81 = por %p79, %p80
    %s83 = sadd.s32 %s82, 1
    %p86 = scmp.eq.s32.totalorder %s13, 1
    %p87 = scmp.ne.s32.totalorder %s82, %s84
    %p88 = scmp.eq.s32.totalorder %s13, 0
    %p89 = por %p87, %p88
    %p90 = scmp.ne.s32.totalorder %s82, %s84
    %p91 = scmp.eq.s32.totalorder %s18, 1
    %p92 = por %p90, %p91
    %p93 = scmp.ne.s32.totalorder %s84, %s85
    %p94 = scmp.eq.s32.totalorder %s18, 0
    %p95 = por %p93, %p94
    %p96 = scmp.ne.s32.totalorder %s84, %s85
    %p97 = scmp.eq.s32.totalorder %s19, 1
    %p98 = por %p96, %p97
    %p100 = scmp.ne.s32.totalorder %s85, %s99
    %p101 = scmp.eq.s32.totalorder %s19, 0
    %p102 = por %p100, %p101
    %s104 = sadd.s32 %s103, 1
    %p107 = scmp.eq.s32.totalorder %s13, 1
    %p108 = scmp.ne.s32.totalorder %s103, %s105
    %p109 = scmp.eq.s32.totalorder %s13, 0
    %p110 = por %p108, %p109
    %p111 = scmp.ne.s32.totalorder %s103, %s105
    %p112 = scmp.eq.s32.totalorder %s18, 1
    %p113 = por %p111, %p112
    %p114 = scmp.ne.s32.totalorder %s105, %s106
    %p115 = scmp.eq.s32.totalorder %s18, 0
    %p116 = por %p114, %p115
    %p117 = scmp.ne.s32.totalorder %s105, %s106
    %p118 = scmp.eq.s32.totalorder %s19, 1
    %p119 = por %p117, %p118
    %p121 = scmp.ne.s32.totalorder %s106, %s120
    %p122 = scmp.eq.s32.totalorder %s19, 0
    %p123 = por %p121, %p122
    %s125 = sadd.s32 %s124, 1
    %p128 = scmp.eq.s32.totalorder %s13, 1
    %p129 = scmp.ne.s32.totalorder %s124, %s126
    %p130 = scmp.eq.s32.totalorder %s13, 0
    %p131 = por %p129, %p130
    %p132 = scmp.ne.s32.totalorder %s124, %s126
    %p133 = scmp.eq.s32.totalorder %s18, 1
    %p134 = por %p132, %p133
    %p135 = scmp.ne.s32.totalorder %s126, %s127
    %p136 = scmp.eq.s32.totalorder %s18, 0
    %p137 = por %p135, %p136
    %p138 = scmp.ne.s32.totalorder %s126, %s127
    %p139 = scmp.eq.s32.totalorder %s19, 1
    %p140 = por %p138, %p139
    %p142 = scmp.ne.s32.totalorder %s127, %s141
    %p143 = scmp.eq.s32.totalorder %s19, 0
    %p144 = por %p142, %p143
    %s146 = sadd.s32 %s145, 1
    %p149 = scmp.eq.s32.totalorder %s13, 1
    %p150 = scmp.ne.s32.totalorder %s145, %s147
    %p151 = scmp.eq.s32.totalorder %s13, 0
    %p152 = por %p150, %p151
    %p153 = scmp.ne.s32.totalorder %s145, %s147
    %p154 = scmp.eq.s32.totalorder %s18, 1
    %p155 = por %p153, %p154
    %p156 = scmp.ne.s32.totalorder %s147, %s148
    %p157 = scmp.eq.s32.totalorder %s18, 0
    %p158 = por %p156, %p157
    %p159 = scmp.ne.s32.totalorder %s147, %s148
    %p160 = scmp.eq.s32.totalorder %s19, 1
    %p161 = por %p159, %p160
    %p163 = scmp.ne.s32.totalorder %s148, %s162
    %p164 = scmp.eq.s32.totalorder %s19, 0
    %p165 = por %p163, %p164
    %s167 = sadd.s32 %s166, 1
    %p170 = scmp.eq.s32.totalorder %s13, 1
    %p171 = scmp.ne.s32.totalorder %s166, %s168
    %p172 = scmp.eq.s32.totalorder %s13, 0
    %p173 = por %p171, %p172
    %p174 = scmp.ne.s32.totalorder %s166, %s168
    %p175 = scmp.eq.s32.totalorder %s18, 1
    %p176 = por %p174, %p175
    %p177 = scmp.ne.s32.totalorder %s168, %s169
    %p178 = scmp.eq.s32.totalorder %s18, 0
    %p179 = por %p177, %p178
    %p180 = scmp.ne.s32.totalorder %s168, %s169
    %p181 = scmp.eq.s32.totalorder %s19, 1
    %p182 = por %p180, %p181
    %p184 = scmp.ne.s32.totalorder %s169, %s183
    %p185 = scmp.eq.s32.totalorder %s19, 0
    %p186 = por %p184, %p185
    %s187 = ssub.s32 %s20, %s32
    %s188 = ssub.s32 %s21, %s28
    %s189 = sor.u32 %s187, %s188
    %p190 = scmp.eq.s32.totalorder %s189, 0
    %s192 = sadd.s32 %s191, 1
    %s193 = scalar_select %p190, %s191, %s192
    %p196 = pneg %p190
    %p197 = scmp.eq.s32.totalorder %s13, 1
    %p198 = por %p196, %p197
    %p199 = scmp.ne.s32.totalorder %s191, %s194
    %p200 = scmp.eq.s32.totalorder %s13, 0
    %p201 = por %p199, %p200
    %p202 = scmp.ne.s32.totalorder %s191, %s194
    %p203 = scmp.eq.s32.totalorder %s18, 1
    %p204 = por %p202, %p203
    %p205 = scmp.ne.s32.totalorder %s194, %s195
    %p206 = scmp.eq.s32.totalorder %s18, 0
    %p207 = por %p205, %p206
    %p208 = scmp.ne.s32.totalorder %s194, %s195
    %p209 = scmp.eq.s32.totalorder %s19, 1
    %p210 = por %p208, %p209
    %p212 = scmp.ne.s32.totalorder %s195, %s211
    %p213 = scmp.eq.s32.totalorder %s19, 0
    %p214 = por %p212, %p213
    %p215 = scmp.le.s32.totalorder 1, %s13
    %p216 = scmp.lt.s32.totalorder %s13, 3
    %p217 = pnand %p215, %p216
    %p218 = pneg %p217
    // Predicated region
    $region9: #{cnn_1d_forward.1} parent=5 // pred_check
      _
    $region10: #{cnn_1d_forward.1} parent=5 // pred_check_branch
      %220 = sbr.rel (%p217) target = $region12
    $region11: #{cnn_1d_forward.1} parent=5 // pred_region
      %s221 = ssub.s32 %s13, 1
      // Predicated region
      $region13: #{cnn_1d_forward.1} parent=11 // pred_check
        %p222 = pneg %p74
      $region14: #{cnn_1d_forward.1} parent=11 // pred_check_branch
        %224 = sbr.rel (%p222) target = $region16
      $region15: #{cnn_1d_forward.1} parent=11 // pred_region
        _
      $region16: #{cnn_1d_forward.1} parent=11 // pred_fallthru
        _
      // Predicated region
      $region17: #{cnn_1d_forward.1} parent=11 // pred_check
        %p225 = pneg %p95
      $region18: #{cnn_1d_forward.1} parent=11 // pred_check_branch
        %227 = sbr.rel (%p225) target = $region20
      $region19: #{cnn_1d_forward.1} parent=11 // pred_region
        _
      $region20: #{cnn_1d_forward.1} parent=11 // pred_fallthru
        _
      // Predicated region
      $region21: #{cnn_1d_forward.1} parent=11 // pred_check
        %p228 = pneg %p116
      $region22: #{cnn_1d_forward.1} parent=11 // pred_check_branch
        %230 = sbr.rel (%p228) target = $region24
      $region23: #{cnn_1d_forward.1} parent=11 // pred_region
        _
      $region24: #{cnn_1d_forward.1} parent=11 // pred_fallthru
        _
      // Predicated region
      $region25: #{cnn_1d_forward.1} parent=11 // pred_check
        %p231 = pneg %p137
      $region26: #{cnn_1d_forward.1} parent=11 // pred_check_branch
        %233 = sbr.rel (%p231) target = $region28
      $region27: #{cnn_1d_forward.1} parent=11 // pred_region
        _
      $region28: #{cnn_1d_forward.1} parent=11 // pred_fallthru
        _
      // Predicated region
      $region29: #{cnn_1d_forward.1} parent=11 // pred_check
        %p234 = pneg %p158
      $region30: #{cnn_1d_forward.1} parent=11 // pred_check_branch
        %236 = sbr.rel (%p234) target = $region32
      $region31: #{cnn_1d_forward.1} parent=11 // pred_region
        _
      $region32: #{cnn_1d_forward.1} parent=11 // pred_fallthru
        _
      // Predicated region
      $region33: #{cnn_1d_forward.1} parent=11 // pred_check
        %p237 = pneg %p179
      $region34: #{cnn_1d_forward.1} parent=11 // pred_check_branch
        %239 = sbr.rel (%p237) target = $region36
      $region35: #{cnn_1d_forward.1} parent=11 // pred_region
        _
      $region36: #{cnn_1d_forward.1} parent=11 // pred_fallthru
        _
    $region12: #{cnn_1d_forward.1} parent=5 // pred_fallthru
      _
    %p240 = scmp.lt.s32.totalorder %s13, 2
    // Predicated region
    $region37: #{cnn_1d_forward.1} parent=5 // pred_check
      %p241 = pneg %p240
    $region38: #{cnn_1d_forward.1} parent=5 // pred_check_branch
      %243 = sbr.rel (%p241) target = $region40
    $region39: #{cnn_1d_forward.1} parent=5 // pred_region
      // Predicated region
      $region41: #{cnn_1d_forward.1} parent=39 // pred_check
        %p244 = pneg %p47
      $region42: #{cnn_1d_forward.1} parent=39 // pred_check_branch
        %246 = sbr.rel (%p244) target = $region44
      $region43: #{cnn_1d_forward.1} parent=39 // pred_region
        %p247 = scmp.lt.s32.totalorder %s20, 1
        %s248 = scalar_select %p247, %s20, 1
        %p249 = scmp.lt.s32.totalorder %s21, 0
        %s250 = scalar_select %p249, %s21, 0
        %s251 = smul.addr %s248, 3
        %s252 = sadd.s32 %s250, %s251
        %s253 = smul.addr %s252, 8
        %s254 = scalar_lea.vmem %s0, %s253
      $region44: #{cnn_1d_forward.1} parent=39 // pred_fallthru
        _
    $region40: #{cnn_1d_forward.1} parent=5 // pred_fallthru
      _
    %p255 = scmp.le.s32.totalorder 1, %s13
    %p256 = scmp.lt.s32.totalorder %s13, 3
    %p257 = pnand %p255, %p256
    %p258 = pneg %p257
    // Predicated region
    $region45: #{cnn_1d_forward.1} parent=5 // pred_check
      _
    $region46: #{cnn_1d_forward.1} parent=5 // pred_check_branch
      %260 = sbr.rel (%p257) target = $region48
    $region47: #{cnn_1d_forward.1} parent=5 // pred_region
      %s261 = ssub.s32 %s13, 1
      %p262 = scmp.lt.s32.totalorder %s22, 1
      %s263 = scalar_select %p262, %s22, 1
      %p264 = scmp.lt.s32.totalorder %s23, 0
      %s265 = scalar_select %p264, %s23, 0
      %s266 = smul.addr %s263, 3
      %s267 = sadd.s32 %s265, %s266
      %s268 = smul.addr %s267, 8
      %s269 = scalar_lea.vmem %s0, %s268
      %p270 = pneg %p53
      %p271 = pneg %p50
      %p272 = pneg %p74
      %p273 = pneg %p71
      %p274 = pneg %p95
      %p275 = pneg %p92
      %p276 = pneg %p116
      %p277 = pneg %p113
      %p278 = pneg %p137
      %p279 = pneg %p134
      %p280 = pneg %p158
      %p281 = pneg %p155
      %p282 = pneg %p179
      %p283 = pneg %p176
      %p284 = pneg %p207
      %p285 = pneg %p204
      %p286 = scmp.lt.s32.totalorder %s22, 1
      %s287 = scalar_select %p286, %s22, 1
      %p288 = scmp.lt.s32.totalorder %s23, 0
      %s289 = scalar_select %p288, %s23, 0
      %s290 = sadd.s32 %s289, %s287
      %s291 = smul.addr %s290, 8
      %s292 = scalar_lea.vmem %s7, %s291
      %p293 = scmp.lt.s32.totalorder %s22, 1
      %s294 = scalar_select %p293, %s22, 1
      %p295 = scmp.lt.s32.totalorder %s23, 0
      %s296 = scalar_select %p295, %s23, 0
      %s297 = smul.addr %s294, 3
      %s298 = sadd.s32 %s296, %s297
      %s299 = smul.addr %s298, 8
      %s300 = scalar_lea.vmem %s0, %s299
      %p301 = scmp.lt.s32.totalorder %s22, 1
      %s302 = scalar_select %p301, %s22, 1
      %p303 = scmp.lt.s32.totalorder %s23, 0
      %s304 = scalar_select %p303, %s23, 0
      %s305 = sadd.s32 %s304, %s302
      %s306 = smul.addr %s305, 8
      %s307 = scalar_lea.vmem %s7, %s306
      %v309 = vld [vmem:[%s300] sm:$0xff]
      %v310 = vld [vmem:[%s300 + $0x8] sm:$0xff]
      %v311 = vld [vmem:[%s300 + $0x10] sm:$0xf]
      %v312 = vpack.c.bf16 %v310, %v309
      %v313 = vpack.c.bf16 %v311, %v311
      %v314 = vld [vmem:[%s1] sm:$0xf]
      %v315 = vld [vmem:[%s1 + $0x4] sm:$0xf]
      %v316 = vld [vmem:[%s1 + $0x8] sm:$0xf]
      %v317 = vld [vmem:[%s1 + $0xc] sm:$0xf]
      %v318 = vld [vmem:[%s1 + $0x10] sm:$0xf]
      %v319 = vld [vmem:[%s1 + $0x14] sm:$0xf]
      %v320 = vld [vmem:[%s1 + $0x18] sm:$0xf]
      %v321 = vld [vmem:[%s1 + $0x1c] sm:$0xf]
      %v322 = vld [vmem:[%s1 + $0x20] sm:$0xf]
      %v323 = vld [vmem:[%s1 + $0x24] sm:$0xf]
      %v324 = vld [vmem:[%s1 + $0x28] sm:$0xf]
      %v325 = vld [vmem:[%s1 + $0x2c] sm:$0xf]
      %v326 = vld [vmem:[%s1 + $0x30] sm:$0xf]
      %v327 = vld [vmem:[%s1 + $0x34] sm:$0xf]
      %v328 = vld [vmem:[%s1 + $0x38] sm:$0xf]
      %v329 = vld [vmem:[%s1 + $0x3c] sm:$0xf]
      %v330 = vld [vmem:[%s1 + $0x40] sm:$0xf]
      %v331 = vld [vmem:[%s1 + $0x44] sm:$0xf]
      %v332 = vld [vmem:[%s1 + $0x48] sm:$0xf]
      %v333 = vld [vmem:[%s1 + $0x4c] sm:$0xf]
      %v334 = vld [vmem:[%s1 + $0x50] sm:$0xf]
      %v335 = vld [vmem:[%s1 + $0x54] sm:$0xf]
      %v336 = vld [vmem:[%s1 + $0x58] sm:$0xf]
      %v337 = vld [vmem:[%s1 + $0x5c] sm:$0xf]
      %v338 = vld [vmem:[%s1 + $0x60] sm:$0xf]
      %v339 = vld [vmem:[%s1 + $0x64] sm:$0xf]
      %v340 = vld [vmem:[%s1 + $0x68] sm:$0xf]
      %v341 = vld [vmem:[%s1 + $0x6c] sm:$0xf]
      %v342 = vld [vmem:[%s1 + $0x70] sm:$0xf]
      %v343 = vld [vmem:[%s1 + $0x74] sm:$0xf]
      %v344 = vld [vmem:[%s1 + $0x78] sm:$0xf]
      %v345 = vld [vmem:[%s1 + $0x7c] sm:$0xf]
      %v346 = vld [vmem:[%s1 + $0x80] sm:$0xf]
      %v347 = vld [vmem:[%s1 + $0x84] sm:$0xf]
      %v348 = vld [vmem:[%s1 + $0x88] sm:$0xf]
      %v349 = vld [vmem:[%s1 + $0x8c] sm:$0xf]
      %v350 = vld [vmem:[%s1 + $0x90] sm:$0xf]
      %v351 = vld [vmem:[%s1 + $0x94] sm:$0xf]
      %v352 = vld [vmem:[%s1 + $0x98] sm:$0xf]
      %v353 = vld [vmem:[%s1 + $0x9c] sm:$0xf]
      %v354 = vld [vmem:[%s1 + $0xa0] sm:$0xf]
      %v355 = vld [vmem:[%s1 + $0xa4] sm:$0xf]
      %v356 = vld [vmem:[%s1 + $0xa8] sm:$0xf]
      %v357 = vld [vmem:[%s1 + $0xac] sm:$0xf]
      %v358 = vld [vmem:[%s1 + $0xb0] sm:$0xf]
      %v359 = vld [vmem:[%s1 + $0xb4] sm:$0xf]
      %v360 = vld [vmem:[%s1 + $0xb8] sm:$0xf]
      %v361 = vld [vmem:[%s1 + $0xbc] sm:$0xf]
      %v362 = vld [vmem:[%s2] sm:$0xff]
      %v363 = vld [vmem:[%s2 + $0x8] sm:$0xff]
      %v364 = vld [vmem:[%s2 + $0x10] sm:$0xff]
      %v365 = vld [vmem:[%s2 + $0x18] sm:$0xff]
      %v366 = vld [vmem:[%s2 + $0x20] sm:$0xff]
      %v367 = vld [vmem:[%s2 + $0x28] sm:$0xff]
      %v368 = vld [vmem:[%s2 + $0x30] sm:$0xff]
      %v369 = vld [vmem:[%s2 + $0x38] sm:$0xff]
      %v370 = vld [vmem:[%s2 + $0x40] sm:$0xff]
      %v371 = vld [vmem:[%s2 + $0x48] sm:$0xff]
      %v372 = vld [vmem:[%s2 + $0x50] sm:$0xff]
      %v373 = vld [vmem:[%s2 + $0x58] sm:$0xff]
      %v374 = vld [vmem:[%s2 + $0x60] sm:$0xff]
      %v375 = vld [vmem:[%s2 + $0x68] sm:$0xff]
      %v376 = vld [vmem:[%s2 + $0x70] sm:$0xff]
      %v377 = vld [vmem:[%s2 + $0x78] sm:$0xff]
      %v378 = vld [vmem:[%s2 + $0x80] sm:$0xff]
      %v379 = vld [vmem:[%s2 + $0x88] sm:$0xff]
      %v380 = vld [vmem:[%s2 + $0x90] sm:$0xff]
      %v381 = vld [vmem:[%s2 + $0x98] sm:$0xff]
      %v382 = vld [vmem:[%s2 + $0xa0] sm:$0xff]
      %v383 = vld [vmem:[%s2 + $0xa8] sm:$0xff]
      %v384 = vld [vmem:[%s2 + $0xb0] sm:$0xff]
      %v385 = vld [vmem:[%s2 + $0xb8] sm:$0xff]
      %v386 = vld [vmem:[%s2 + $0xc0] sm:$0xff]
      %v387 = vld [vmem:[%s2 + $0xc8] sm:$0xff]
      %v388 = vld [vmem:[%s2 + $0xd0] sm:$0xff]
      %v389 = vld [vmem:[%s2 + $0xd8] sm:$0xff]
      %v390 = vld [vmem:[%s2 + $0xe0] sm:$0xff]
      %v391 = vld [vmem:[%s2 + $0xe8] sm:$0xff]
      %v392 = vld [vmem:[%s2 + $0xf0] sm:$0xff]
      %v393 = vld [vmem:[%s2 + $0xf8] sm:$0xff]
      %v394 = vld [vmem:[%s2 + $0x100] sm:$0xff]
      %v395 = vld [vmem:[%s2 + $0x108] sm:$0xff]
      %v396 = vld [vmem:[%s2 + $0x110] sm:$0xff]
      %v397 = vld [vmem:[%s2 + $0x118] sm:$0xff]
      %v398 = vld [vmem:[%s2 + $0x120] sm:$0xff]
      %v399 = vld [vmem:[%s2 + $0x128] sm:$0xff]
      %v400 = vld [vmem:[%s2 + $0x130] sm:$0xff]
      %v401 = vld [vmem:[%s2 + $0x138] sm:$0xff]
      %v402 = vld [vmem:[%s2 + $0x140] sm:$0xff]
      %v403 = vld [vmem:[%s2 + $0x148] sm:$0xff]
      %v404 = vld [vmem:[%s2 + $0x150] sm:$0xff]
      %v405 = vld [vmem:[%s2 + $0x158] sm:$0xff]
      %v406 = vld [vmem:[%s2 + $0x160] sm:$0xff]
      %v407 = vld [vmem:[%s2 + $0x168] sm:$0xff]
      %v408 = vld [vmem:[%s2 + $0x170] sm:$0xff]
      %v409 = vld [vmem:[%s2 + $0x178] sm:$0xff]
      %411 = vset.pattern.permute.xlu0 0
      %412 = vperm.xlu0 %411, %v362
      %v413 = vpop.permute.xlu0 %412
      %416 = vset.pattern.permute.xlu0 0
      %417 = vperm.xlu0 %416, %v363
      %v418 = vpop.permute.xlu0 %417
      %421 = vset.pattern.permute.xlu0 0
      %422 = vperm.xlu0 %421, %v364
      %v423 = vpop.permute.xlu0 %422
      %426 = vset.pattern.permute.xlu0 0
      %427 = vperm.xlu0 %426, %v365
      %v428 = vpop.permute.xlu0 %427
      %431 = vset.pattern.permute.xlu0 0
      %432 = vperm.xlu0 %431, %v366
      %v433 = vpop.permute.xlu0 %432
      %436 = vset.pattern.permute.xlu0 0
      %437 = vperm.xlu0 %436, %v367
      %v438 = vpop.permute.xlu0 %437
      %441 = vset.pattern.permute.xlu0 0
      %442 = vperm.xlu0 %441, %v368
      %v443 = vpop.permute.xlu0 %442
      %446 = vset.pattern.permute.xlu0 0
      %447 = vperm.xlu0 %446, %v369
      %v448 = vpop.permute.xlu0 %447
      %451 = vset.pattern.permute.xlu0 0
      %452 = vperm.xlu0 %451, %v370
      %v453 = vpop.permute.xlu0 %452
      %456 = vset.pattern.permute.xlu0 0
      %457 = vperm.xlu0 %456, %v371
      %v458 = vpop.permute.xlu0 %457
      %461 = vset.pattern.permute.xlu0 0
      %462 = vperm.xlu0 %461, %v372
      %v463 = vpop.permute.xlu0 %462
      %466 = vset.pattern.permute.xlu0 0
      %467 = vperm.xlu0 %466, %v373
      %v468 = vpop.permute.xlu0 %467
      %471 = vset.pattern.permute.xlu0 0
      %472 = vperm.xlu0 %471, %v374
      %v473 = vpop.permute.xlu0 %472
      %476 = vset.pattern.permute.xlu0 0
      %477 = vperm.xlu0 %476, %v375
      %v478 = vpop.permute.xlu0 %477
      %481 = vset.pattern.permute.xlu0 0
      %482 = vperm.xlu0 %481, %v376
      %v483 = vpop.permute.xlu0 %482
      %486 = vset.pattern.permute.xlu0 0
      %487 = vperm.xlu0 %486, %v377
      %v488 = vpop.permute.xlu0 %487
      %491 = vset.pattern.permute.xlu0 0
      %492 = vperm.xlu0 %491, %v378
      %v493 = vpop.permute.xlu0 %492
      %496 = vset.pattern.permute.xlu0 0
      %497 = vperm.xlu0 %496, %v379
      %v498 = vpop.permute.xlu0 %497
      %501 = vset.pattern.permute.xlu0 0
      %502 = vperm.xlu0 %501, %v380
      %v503 = vpop.permute.xlu0 %502
      %506 = vset.pattern.permute.xlu0 0
      %507 = vperm.xlu0 %506, %v381
      %v508 = vpop.permute.xlu0 %507
      %511 = vset.pattern.permute.xlu0 0
      %512 = vperm.xlu0 %511, %v382
      %v513 = vpop.permute.xlu0 %512
      %516 = vset.pattern.permute.xlu0 0
      %517 = vperm.xlu0 %516, %v383
      %v518 = vpop.permute.xlu0 %517
      %521 = vset.pattern.permute.xlu0 0
      %522 = vperm.xlu0 %521, %v384
      %v523 = vpop.permute.xlu0 %522
      %526 = vset.pattern.permute.xlu0 0
      %527 = vperm.xlu0 %526, %v385
      %v528 = vpop.permute.xlu0 %527
      %531 = vset.pattern.permute.xlu0 0
      %532 = vperm.xlu0 %531, %v386
      %v533 = vpop.permute.xlu0 %532
      %536 = vset.pattern.permute.xlu0 0
      %537 = vperm.xlu0 %536, %v387
      %v538 = vpop.permute.xlu0 %537
      %541 = vset.pattern.permute.xlu0 0
      %542 = vperm.xlu0 %541, %v388
      %v543 = vpop.permute.xlu0 %542
      %546 = vset.pattern.permute.xlu0 0
      %547 = vperm.xlu0 %546, %v389
      %v548 = vpop.permute.xlu0 %547
      %551 = vset.pattern.permute.xlu0 0
      %552 = vperm.xlu0 %551, %v390
      %v553 = vpop.permute.xlu0 %552
      %556 = vset.pattern.permute.xlu0 0
      %557 = vperm.xlu0 %556, %v391
      %v558 = vpop.permute.xlu0 %557
      %561 = vset.pattern.permute.xlu0 0
      %562 = vperm.xlu0 %561, %v392
      %v563 = vpop.permute.xlu0 %562
      %566 = vset.pattern.permute.xlu0 0
      %567 = vperm.xlu0 %566, %v393
      %v568 = vpop.permute.xlu0 %567
      %571 = vset.pattern.permute.xlu0 0
      %572 = vperm.xlu0 %571, %v394
      %v573 = vpop.permute.xlu0 %572
      %576 = vset.pattern.permute.xlu0 0
      %577 = vperm.xlu0 %576, %v395
      %v578 = vpop.permute.xlu0 %577
      %581 = vset.pattern.permute.xlu0 0
      %582 = vperm.xlu0 %581, %v396
      %v583 = vpop.permute.xlu0 %582
      %586 = vset.pattern.permute.xlu0 0
      %587 = vperm.xlu0 %586, %v397
      %v588 = vpop.permute.xlu0 %587
      %591 = vset.pattern.permute.xlu0 0
      %592 = vperm.xlu0 %591, %v398
      %v593 = vpop.permute.xlu0 %592
      %596 = vset.pattern.permute.xlu0 0
      %597 = vperm.xlu0 %596, %v399
      %v598 = vpop.permute.xlu0 %597
      %601 = vset.pattern.permute.xlu0 0
      %602 = vperm.xlu0 %601, %v400
      %v603 = vpop.permute.xlu0 %602
      %606 = vset.pattern.permute.xlu0 0
      %607 = vperm.xlu0 %606, %v401
      %v608 = vpop.permute.xlu0 %607
      %611 = vset.pattern.permute.xlu0 0
      %612 = vperm.xlu0 %611, %v402
      %v613 = vpop.permute.xlu0 %612
      %616 = vset.pattern.permute.xlu0 0
      %617 = vperm.xlu0 %616, %v403
      %v618 = vpop.permute.xlu0 %617
      %621 = vset.pattern.permute.xlu0 0
      %622 = vperm.xlu0 %621, %v404
      %v623 = vpop.permute.xlu0 %622
      %626 = vset.pattern.permute.xlu0 0
      %627 = vperm.xlu0 %626, %v405
      %v628 = vpop.permute.xlu0 %627
      %631 = vset.pattern.permute.xlu0 0
      %632 = vperm.xlu0 %631, %v406
      %v633 = vpop.permute.xlu0 %632
      %636 = vset.pattern.permute.xlu0 0
      %637 = vperm.xlu0 %636, %v407
      %v638 = vpop.permute.xlu0 %637
      %641 = vset.pattern.permute.xlu0 0
      %642 = vperm.xlu0 %641, %v408
      %v643 = vpop.permute.xlu0 %642
      %646 = vset.pattern.permute.xlu0 0
      %647 = vperm.xlu0 %646, %v409
      %v648 = vpop.permute.xlu0 %647
      %v698 = vunpack.c.l.b16 %v314
      %v699 = vunpack.c.l.b16 %v315
      %v700 = vunpack.c.l.b16 %v316
      %v701 = vunpack.c.l.b16 %v317
      %v702 = vunpack.c.l.b16 %v318
      %v703 = vunpack.c.l.b16 %v319
      %v704 = vunpack.c.l.b16 %v320
      %v705 = vunpack.c.l.b16 %v321
      %v706 = vunpack.c.l.b16 %v322
      %v707 = vunpack.c.l.b16 %v323
      %v708 = vunpack.c.l.b16 %v324
      %v709 = vunpack.c.l.b16 %v325
      %v710 = vunpack.c.l.b16 %v326
      %v711 = vunpack.c.l.b16 %v327
      %v712 = vunpack.c.l.b16 %v328
      %v713 = vunpack.c.l.b16 %v329
      %v714 = vunpack.c.l.b16 %v330
      %v715 = vunpack.c.l.b16 %v331
      %v716 = vunpack.c.l.b16 %v332
      %v717 = vunpack.c.l.b16 %v333
      %v718 = vunpack.c.l.b16 %v334
      %v719 = vunpack.c.l.b16 %v335
      %v720 = vunpack.c.l.b16 %v336
      %v721 = vunpack.c.l.b16 %v337
      %v722 = vunpack.c.l.b16 %v338
      %v723 = vunpack.c.l.b16 %v339
      %v724 = vunpack.c.l.b16 %v340
      %v725 = vunpack.c.l.b16 %v341
      %v726 = vunpack.c.l.b16 %v342
      %v727 = vunpack.c.l.b16 %v343
      %v728 = vunpack.c.l.b16 %v344
      %v729 = vunpack.c.l.b16 %v345
      %v730 = vunpack.c.l.b16 %v346
      %v731 = vunpack.c.l.b16 %v347
      %v732 = vunpack.c.l.b16 %v348
      %v733 = vunpack.c.l.b16 %v349
      %v734 = vunpack.c.l.b16 %v350
      %v735 = vunpack.c.l.b16 %v351
      %v736 = vunpack.c.l.b16 %v352
      %v737 = vunpack.c.l.b16 %v353
      %v738 = vunpack.c.l.b16 %v354
      %v739 = vunpack.c.l.b16 %v355
      %v740 = vunpack.c.l.b16 %v356
      %v741 = vunpack.c.l.b16 %v357
      %v742 = vunpack.c.l.b16 %v358
      %v743 = vunpack.c.l.b16 %v359
      %v744 = vunpack.c.l.b16 %v360
      %v745 = vunpack.c.l.b16 %v361
      %v746 = vpack.c.b16 %v699, %v698
      %v747 = vpack.c.b16 %v701, %v700
      %v748 = vpack.c.b16 %v703, %v702
      %v749 = vpack.c.b16 %v705, %v704
      %v750 = vpack.c.b16 %v707, %v706
      %v751 = vpack.c.b16 %v709, %v708
      %v752 = vpack.c.b16 %v711, %v710
      %v753 = vpack.c.b16 %v713, %v712
      %v754 = vpack.c.b16 %v715, %v714
      %v755 = vpack.c.b16 %v717, %v716
      %v756 = vpack.c.b16 %v719, %v718
      %v757 = vpack.c.b16 %v721, %v720
      %v758 = vpack.c.b16 %v723, %v722
      %v759 = vpack.c.b16 %v725, %v724
      %v760 = vpack.c.b16 %v727, %v726
      %v761 = vpack.c.b16 %v729, %v728
      %v762 = vpack.c.b16 %v731, %v730
      %v763 = vpack.c.b16 %v733, %v732
      %v764 = vpack.c.b16 %v735, %v734
      %v765 = vpack.c.b16 %v737, %v736
      %v766 = vpack.c.b16 %v739, %v738
      %v767 = vpack.c.b16 %v741, %v740
      %v768 = vpack.c.b16 %v743, %v742
      %v769 = vpack.c.b16 %v745, %v744
      %vm770 = vcmask 162816
      %v772 = vsel %vm770, %v746, 0
      %v775 = vsel %vm770, %v747, 0
      %v778 = vsel %vm770, %v748, 0
      %v781 = vsel %vm770, %v749, 0
      %v784 = vsel %vm770, %v750, 0
      %v787 = vsel %vm770, %v751, 0
      %v790 = vsel %vm770, %v752, 0
      %v793 = vsel %vm770, %v753, 0
      %v796 = vsel %vm770, %v754, 0
      %v799 = vsel %vm770, %v755, 0
      %v802 = vsel %vm770, %v756, 0
      %v805 = vsel %vm770, %v757, 0
      %v808 = vsel %vm770, %v758, 0
      %v811 = vsel %vm770, %v759, 0
      %v814 = vsel %vm770, %v760, 0
      %v817 = vsel %vm770, %v761, 0
      %v820 = vsel %vm770, %v762, 0
      %v823 = vsel %vm770, %v763, 0
      %v826 = vsel %vm770, %v764, 0
      %v829 = vsel %vm770, %v765, 0
      %v832 = vsel %vm770, %v766, 0
      %v835 = vsel %vm770, %v767, 0
      %v838 = vsel %vm770, %v768, 0
      %v841 = vsel %vm770, %v769, 0
      %vm843 = vcmask 1041408
      %v845 = vsel %vm843, %v313, 0
      %847 = vmatprep.subr.bf16.mxu0 0
      %848 = vmatpush1.bf16.msra.mxu0 %v312
      %849 = vmatprep.subr.bf16.mxu0 0
      %850 = vmatpush1.bf16.msra.mxu0 %v845
      %851 = vmatprep.subr.bf16.mxu0 0
      %852 = vmatpush1.bf16.msra.mxu0 0
      %853 = vmatprep.subr.bf16.mxu0 0
      %854 = vmatpush1.bf16.msra.mxu0 0
      %855 = vmatprep.subr.bf16.mxu0 0
      %856 = vmatpush1.bf16.msra.mxu0 0
      %857 = vmatprep.subr.bf16.mxu0 0
      %858 = vmatpush1.bf16.msra.mxu0 0
      %859 = vmatprep.subr.bf16.mxu0 0
      %860 = vmatpush1.bf16.msra.mxu0 0
      %861 = vmatprep.subr.bf16.mxu0 0
      %862 = vmatpush1.bf16.msra.mxu0 0
      %863 = vmatprep.subr.bf16.mxu0 0
      %864 = vmatpush1.bf16.msra.mxu0 0
      %865 = vmatprep.subr.bf16.mxu0 0
      %866 = vmatpush1.bf16.msra.mxu0 0
      %867 = vmatprep.subr.bf16.mxu0 0
      %868 = vmatpush1.bf16.msra.mxu0 0
      %869 = vmatprep.subr.bf16.mxu0 0
      %870 = vmatpush1.bf16.msra.mxu0 0
      %871 = vmatprep.subr.bf16.mxu0 0
      %872 = vmatpush1.bf16.msra.mxu0 0
      %873 = vmatprep.subr.bf16.mxu0 0
      %874 = vmatpush1.bf16.msra.mxu0 0
      %875 = vmatprep.subr.bf16.mxu0 0
      %876 = vmatpush1.bf16.msra.mxu0 0
      %877 = vmatprep.subr.bf16.mxu0 0
      %878 = vmatpush1.bf16.msra.mxu0 0
      %879 = vmatprep.mubr.bf16.mxu0 0
      %880 = vmatmul.mubr.bf16.gmra.mrb[0].mxu0 %v772
      %v881 = vpop.f32.mrb[0].mxu0
      %v882 = vadd.f32 %v413, %v881
      %v883 = vpop.f32.mrb[0].mxu0
      %v884 = vpop.f32.mrb[0].mxu0
      %v885 = vadd.f32 %v418, %v884
      %v886 = vpop.f32.mrb[0].mxu0
      %887 = vmatprep.mubr.bf16.mxu0 0
      %888 = vmatmul.mubr.bf16.gmra.mrb[0].mxu0 %v775
      %v889 = vpop.f32.mrb[0].mxu0
      %v890 = vadd.f32 %v423, %v889
      %v891 = vpop.f32.mrb[0].mxu0
      %v892 = vpop.f32.mrb[0].mxu0
      %v893 = vadd.f32 %v428, %v892
      %v894 = vpop.f32.mrb[0].mxu0
      %895 = vmatprep.mubr.bf16.mxu0 0
      %896 = vmatmul.mubr.bf16.gmra.mrb[0].mxu0 %v778
      %v897 = vpop.f32.mrb[0].mxu0
      %v898 = vadd.f32 %v433, %v897
      %v899 = vpop.f32.mrb[0].mxu0
      %v900 = vpop.f32.mrb[0].mxu0
      %v901 = vadd.f32 %v438, %v900
      %v902 = vpop.f32.mrb[0].mxu0
      %903 = vmatprep.mubr.bf16.mxu0 0
      %904 = vmatmul.mubr.bf16.gmra.mrb[0].mxu0 %v781
      %v905 = vpop.f32.mrb[0].mxu0
      %v906 = vadd.f32 %v443, %v905
      %v907 = vpop.f32.mrb[0].mxu0
      %v908 = vpop.f32.mrb[0].mxu0
      %v909 = vadd.f32 %v448, %v908
      %v910 = vpop.f32.mrb[0].mxu0
      %911 = vmatprep.mubr.bf16.mxu0 0
      %912 = vmatmul.mubr.bf16.gmra.mrb[0].mxu0 %v784
      %v913 = vpop.f32.mrb[0].mxu0
      %v914 = vadd.f32 %v453, %v913
      %v915 = vpop.f32.mrb[0].mxu0
      %v916 = vpop.f32.mrb[0].mxu0
      %v917 = vadd.f32 %v458, %v916
      %v918 = vpop.f32.mrb[0].mxu0
      %919 = vmatprep.mubr.bf16.mxu0 0
      %920 = vmatmul.mubr.bf16.gmra.mrb[0].mxu0 %v787
      %v921 = vpop.f32.mrb[0].mxu0
      %v922 = vadd.f32 %v463, %v921
      %v923 = vpop.f32.mrb[0].mxu0
      %v924 = vpop.f32.mrb[0].mxu0
      %v925 = vadd.f32 %v468, %v924
      %v926 = vpop.f32.mrb[0].mxu0
      %927 = vmatprep.mubr.bf16.mxu0 0
      %928 = vmatmul.mubr.bf16.gmra.mrb[0].mxu0 %v790
      %v929 = vpop.f32.mrb[0].mxu0
      %v930 = vadd.f32 %v473, %v929
      %v931 = vpop.f32.mrb[0].mxu0
      %v932 = vpop.f32.mrb[0].mxu0
      %v933 = vadd.f32 %v478, %v932
      %v934 = vpop.f32.mrb[0].mxu0
      %935 = vmatprep.mubr.bf16.mxu0 0
      %936 = vmatmul.mubr.bf16.gmra.mrb[0].mxu0 %v793
      %v937 = vpop.f32.mrb[0].mxu0
      %v938 = vadd.f32 %v483, %v937
      %v939 = vpop.f32.mrb[0].mxu0
      %v940 = vpop.f32.mrb[0].mxu0
      %v941 = vadd.f32 %v488, %v940
      %v942 = vpop.f32.mrb[0].mxu0
      %943 = vmatprep.mubr.bf16.mxu0 0
      %944 = vmatmul.mubr.bf16.gmra.mrb[0].mxu0 %v796
      %v945 = vpop.f32.mrb[0].mxu0
      %v946 = vadd.f32 %v493, %v945
      %v947 = vpop.f32.mrb[0].mxu0
      %v948 = vpop.f32.mrb[0].mxu0
      %v949 = vadd.f32 %v498, %v948
      %v950 = vpop.f32.mrb[0].mxu0
      %951 = vmatprep.mubr.bf16.mxu0 0
      %952 = vmatmul.mubr.bf16.gmra.mrb[0].mxu0 %v799
      %v953 = vpop.f32.mrb[0].mxu0
      %v954 = vadd.f32 %v503, %v953
      %v955 = vpop.f32.mrb[0].mxu0
      %v956 = vpop.f32.mrb[0].mxu0
      %v957 = vadd.f32 %v508, %v956
      %v958 = vpop.f32.mrb[0].mxu0
      %959 = vmatprep.mubr.bf16.mxu0 0
      %960 = vmatmul.mubr.bf16.gmra.mrb[0].mxu0 %v802
      %v961 = vpop.f32.mrb[0].mxu0
      %v962 = vadd.f32 %v513, %v961
      %v963 = vpop.f32.mrb[0].mxu0
      %v964 = vpop.f32.mrb[0].mxu0
      %v965 = vadd.f32 %v518, %v964
      %v966 = vpop.f32.mrb[0].mxu0
      %967 = vmatprep.mubr.bf16.mxu0 0
      %968 = vmatmul.mubr.bf16.gmra.mrb[0].mxu0 %v805
      %v969 = vpop.f32.mrb[0].mxu0
      %v970 = vadd.f32 %v523, %v969
      %v971 = vpop.f32.mrb[0].mxu0
      %v972 = vpop.f32.mrb[0].mxu0
      %v973 = vadd.f32 %v528, %v972
      %v974 = vpop.f32.mrb[0].mxu0
      %975 = vmatprep.mubr.bf16.mxu0 0
      %976 = vmatmul.mubr.bf16.gmra.mrb[0].mxu0 %v808
      %v977 = vpop.f32.mrb[0].mxu0
      %v978 = vadd.f32 %v533, %v977
      %v979 = vpop.f32.mrb[0].mxu0
      %v980 = vpop.f32.mrb[0].mxu0
      %v981 = vadd.f32 %v538, %v980
      %v982 = vpop.f32.mrb[0].mxu0
      %983 = vmatprep.mubr.bf16.mxu0 0
      %984 = vmatmul.mubr.bf16.gmra.mrb[0].mxu0 %v811
      %v985 = vpop.f32.mrb[0].mxu0
      %v986 = vadd.f32 %v543, %v985
      %v987 = vpop.f32.mrb[0].mxu0
      %v988 = vpop.f32.mrb[0].mxu0
      %v989 = vadd.f32 %v548, %v988
      %v990 = vpop.f32.mrb[0].mxu0
      %991 = vmatprep.mubr.bf16.mxu0 0
      %992 = vmatmul.mubr.bf16.gmra.mrb[0].mxu0 %v814
      %v993 = vpop.f32.mrb[0].mxu0
      %v994 = vadd.f32 %v553, %v993
      %v995 = vpop.f32.mrb[0].mxu0
      %v996 = vpop.f32.mrb[0].mxu0
      %v997 = vadd.f32 %v558, %v996
      %v998 = vpop.f32.mrb[0].mxu0
      %999 = vmatprep.mubr.bf16.mxu0 0
      %1000 = vmatmul.mubr.bf16.gmra.mrb[0].mxu0 %v817
      %v1001 = vpop.f32.mrb[0].mxu0
      %v1002 = vadd.f32 %v563, %v1001
      %v1003 = vpop.f32.mrb[0].mxu0
      %v1004 = vpop.f32.mrb[0].mxu0
      %v1005 = vadd.f32 %v568, %v1004
      %v1006 = vpop.f32.mrb[0].mxu0
      %1007 = vmatprep.mubr.bf16.mxu0 0
      %1008 = vmatmul.mubr.bf16.gmra.mrb[0].mxu0 %v820
      %v1009 = vpop.f32.mrb[0].mxu0
      %v1010 = vadd.f32 %v573, %v1009
      %v1011 = vpop.f32.mrb[0].mxu0
      %v1012 = vpop.f32.mrb[0].mxu0
      %v1013 = vadd.f32 %v578, %v1012
      %v1014 = vpop.f32.mrb[0].mxu0
      %1015 = vmatprep.mubr.bf16.mxu0 0
      %1016 = vmatmul.mubr.bf16.gmra.mrb[0].mxu0 %v823
      %v1017 = vpop.f32.mrb[0].mxu0
      %v1018 = vadd.f32 %v583, %v1017
      %v1019 = vpop.f32.mrb[0].mxu0
      %v1020 = vpop.f32.mrb[0].mxu0
      %v1021 = vadd.f32 %v588, %v1020
      %v1022 = vpop.f32.mrb[0].mxu0
      %1023 = vmatprep.mubr.bf16.mxu0 0
      %1024 = vmatmul.mubr.bf16.gmra.mrb[0].mxu0 %v826
      %v1025 = vpop.f32.mrb[0].mxu0
      %v1026 = vadd.f32 %v593, %v1025
      %v1027 = vpop.f32.mrb[0].mxu0
      %v1028 = vpop.f32.mrb[0].mxu0
      %v1029 = vadd.f32 %v598, %v1028
      %v1030 = vpop.f32.mrb[0].mxu0
      %1031 = vmatprep.mubr.bf16.mxu0 0
      %1032 = vmatmul.mubr.bf16.gmra.mrb[0].mxu0 %v829
      %v1033 = vpop.f32.mrb[0].mxu0
      %v1034 = vadd.f32 %v603, %v1033
      %v1035 = vpop.f32.mrb[0].mxu0
      %v1036 = vpop.f32.mrb[0].mxu0
      %v1037 = vadd.f32 %v608, %v1036
      %v1038 = vpop.f32.mrb[0].mxu0
      %1039 = vmatprep.mubr.bf16.mxu0 0
      %1040 = vmatmul.mubr.bf16.gmra.mrb[0].mxu0 %v832
      %v1041 = vpop.f32.mrb[0].mxu0
      %v1042 = vadd.f32 %v613, %v1041
      %v1043 = vpop.f32.mrb[0].mxu0
      %v1044 = vpop.f32.mrb[0].mxu0
      %v1045 = vadd.f32 %v618, %v1044
      %v1046 = vpop.f32.mrb[0].mxu0
      %1047 = vmatprep.mubr.bf16.mxu0 0
      %1048 = vmatmul.mubr.bf16.gmra.mrb[0].mxu0 %v835
      %v1049 = vpop.f32.mrb[0].mxu0
      %v1050 = vadd.f32 %v623, %v1049
      %v1051 = vpop.f32.mrb[0].mxu0
      %v1052 = vpop.f32.mrb[0].mxu0
      %v1053 = vadd.f32 %v628, %v1052
      %v1054 = vpop.f32.mrb[0].mxu0
      %1055 = vmatprep.mubr.bf16.mxu0 0
      %1056 = vmatmul.mubr.bf16.gmra.mrb[0].mxu0 %v838
      %v1057 = vpop.f32.mrb[0].mxu0
      %v1058 = vadd.f32 %v633, %v1057
      %v1059 = vpop.f32.mrb[0].mxu0
      %v1060 = vpop.f32.mrb[0].mxu0
      %v1061 = vadd.f32 %v638, %v1060
      %v1062 = vpop.f32.mrb[0].mxu0
      %1063 = vmatprep.mubr.bf16.mxu0 0
      %1064 = vmatmul.mubr.bf16.gmra.mrb[0].mxu0 %v841
      %v1065 = vpop.f32.mrb[0].mxu0
      %v1066 = vadd.f32 %v643, %v1065
      %v1067 = vpop.f32.mrb[0].mxu0
      %v1068 = vpop.f32.mrb[0].mxu0
      %v1069 = vadd.f32 %v648, %v1068
      %v1070 = vpop.f32.mrb[0].mxu0
      %1071 = vdwg.mxu0
      %v1072 = vtanh.pop %v882
      %v1073 = vtanh.pop %v885
      %v1074 = vtanh.pop %v890
      %v1075 = vtanh.pop %v893
      %v1076 = vtanh.pop %v898
      %v1077 = vtanh.pop %v901
      %v1078 = vtanh.pop %v906
      %v1079 = vtanh.pop %v909
      %v1080 = vtanh.pop %v914
      %v1081 = vtanh.pop %v917
      %v1082 = vtanh.pop %v922
      %v1083 = vtanh.pop %v925
      %v1084 = vtanh.pop %v930
      %v1085 = vtanh.pop %v933
      %v1086 = vtanh.pop %v938
      %v1087 = vtanh.pop %v941
      %v1088 = vtanh.pop %v946
      %v1089 = vtanh.pop %v949
      %v1090 = vtanh.pop %v954
      %v1091 = vtanh.pop %v957
      %v1092 = vtanh.pop %v962
      %v1093 = vtanh.pop %v965
      %v1094 = vtanh.pop %v970
      %v1095 = vtanh.pop %v973
      %v1096 = vtanh.pop %v978
      %v1097 = vtanh.pop %v981
      %v1098 = vtanh.pop %v986
      %v1099 = vtanh.pop %v989
      %v1100 = vtanh.pop %v994
      %v1101 = vtanh.pop %v997
      %v1102 = vtanh.pop %v1002
      %v1103 = vtanh.pop %v1005
      %v1104 = vtanh.pop %v1010
      %v1105 = vtanh.pop %v1013
      %v1106 = vtanh.pop %v1018
      %v1107 = vtanh.pop %v1021
      %v1108 = vtanh.pop %v1026
      %v1109 = vtanh.pop %v1029
      %v1110 = vtanh.pop %v1034
      %v1111 = vtanh.pop %v1037
      %v1112 = vtanh.pop %v1042
      %v1113 = vtanh.pop %v1045
      %v1114 = vtanh.pop %v1050
      %v1115 = vtanh.pop %v1053
      %v1116 = vtanh.pop %v1058
      %v1117 = vtanh.pop %v1061
      %v1118 = vtanh.pop %v1066
      %v1119 = vtanh.pop %v1069
      %v1120 = vld [vmem:[%s3] sm:$0xff]
      %v1121 = vld [vmem:[%s3 + $0x8] sm:$0xf]
      %v1122 = vld [vmem:[%s3 + $0xc] sm:$0xff]
      %v1123 = vld [vmem:[%s3 + $0x14] sm:$0xf]
      %v1124 = vld [vmem:[%s3 + $0x18] sm:$0xff]
      %v1125 = vld [vmem:[%s3 + $0x20] sm:$0xf]
      %v1126 = vld [vmem:[%s3 + $0x24] sm:$0xff]
      %v1127 = vld [vmem:[%s3 + $0x2c] sm:$0xf]
      %v1128 = vld [vmem:[%s3 + $0x30] sm:$0xff]
      %v1129 = vld [vmem:[%s3 + $0x38] sm:$0xf]
      %v1130 = vld [vmem:[%s3 + $0x3c] sm:$0xff]
      %v1131 = vld [vmem:[%s3 + $0x44] sm:$0xf]
      %v1132 = vld [vmem:[%s3 + $0x48] sm:$0xff]
      %v1133 = vld [vmem:[%s3 + $0x50] sm:$0xf]
      %v1134 = vld [vmem:[%s3 + $0x54] sm:$0xff]
      %v1135 = vld [vmem:[%s3 + $0x5c] sm:$0xf]
      %v1136 = vld [vmem:[%s3 + $0x60] sm:$0xff]
      %v1137 = vld [vmem:[%s3 + $0x68] sm:$0xf]
      %v1138 = vld [vmem:[%s3 + $0x6c] sm:$0xff]
      %v1139 = vld [vmem:[%s3 + $0x74] sm:$0xf]
      %v1140 = vld [vmem:[%s3 + $0x78] sm:$0xff]
      %v1141 = vld [vmem:[%s3 + $0x80] sm:$0xf]
      %v1142 = vld [vmem:[%s3 + $0x84] sm:$0xff]
      %v1143 = vld [vmem:[%s3 + $0x8c] sm:$0xf]
      %v1144 = vld [vmem:[%s3 + $0x90] sm:$0xff]
      %v1145 = vld [vmem:[%s3 + $0x98] sm:$0xf]
      %v1146 = vld [vmem:[%s3 + $0x9c] sm:$0xff]
      %v1147 = vld [vmem:[%s3 + $0xa4] sm:$0xf]
      %v1148 = vld [vmem:[%s3 + $0xa8] sm:$0xff]
      %v1149 = vld [vmem:[%s3 + $0xb0] sm:$0xf]
      %v1150 = vld [vmem:[%s3 + $0xb4] sm:$0xff]
      %v1151 = vld [vmem:[%s3 + $0xbc] sm:$0xf]
      %v1152 = vpack.c.bf16 %v1073, %v1072
      %v1153 = vpack.c.bf16 %v1075, %v1074
      %v1154 = vpack.c.bf16 %v1077, %v1076
      %v1155 = vpack.c.bf16 %v1079, %v1078
      %v1156 = vpack.c.bf16 %v1081, %v1080
      %v1157 = vpack.c.bf16 %v1083, %v1082
      %v1158 = vpack.c.bf16 %v1085, %v1084
      %v1159 = vpack.c.bf16 %v1087, %v1086
      %v1160 = vpack.c.bf16 %v1089, %v1088
      %v1161 = vpack.c.bf16 %v1091, %v1090
      %v1162 = vpack.c.bf16 %v1093, %v1092
      %v1163 = vpack.c.bf16 %v1095, %v1094
      %v1164 = vpack.c.bf16 %v1097, %v1096
      %v1165 = vpack.c.bf16 %v1099, %v1098
      %v1166 = vpack.c.bf16 %v1101, %v1100
      %v1167 = vpack.c.bf16 %v1103, %v1102
      %v1168 = vpack.c.bf16 %v1105, %v1104
      %v1169 = vpack.c.bf16 %v1107, %v1106
      %v1170 = vpack.c.bf16 %v1109, %v1108
      %v1171 = vpack.c.bf16 %v1111, %v1110
      %v1172 = vpack.c.bf16 %v1113, %v1112
      %v1173 = vpack.c.bf16 %v1115, %v1114
      %v1174 = vpack.c.bf16 %v1117, %v1116
      %v1175 = vpack.c.bf16 %v1119, %v1118
      %v1176 = vld [vmem:[%s4] sm:$0xff]
      %v1177 = vld [vmem:[%s4 + $0x8] sm:$0xff]
      %v1178 = vld [vmem:[%s4 + $0x10] sm:$0xff]
      %v1179 = vld [vmem:[%s4 + $0x18] sm:$0xff]
      %v1180 = vld [vmem:[%s4 + $0x20] sm:$0xff]
      %v1181 = vld [vmem:[%s4 + $0x28] sm:$0xff]
      %v1182 = vld [vmem:[%s4 + $0x30] sm:$0xff]
      %v1183 = vld [vmem:[%s4 + $0x38] sm:$0xff]
      %v1184 = vld [vmem:[%s4 + $0x40] sm:$0xff]
      %v1185 = vld [vmem:[%s4 + $0x48] sm:$0xff]
      %v1186 = vld [vmem:[%s4 + $0x50] sm:$0xff]
      %v1187 = vld [vmem:[%s4 + $0x58] sm:$0xff]
      %v1188 = vld [vmem:[%s4 + $0x60] sm:$0xff]
      %v1189 = vld [vmem:[%s4 + $0x68] sm:$0xff]
      %v1190 = vld [vmem:[%s4 + $0x70] sm:$0xff]
      %v1191 = vld [vmem:[%s4 + $0x78] sm:$0xff]
      %1193 = vset.pattern.permute.xlu0 0
      %1194 = vperm.xlu0 %1193, %v1176
      %v1195 = vpop.permute.xlu0 %1194
      %1198 = vset.pattern.permute.xlu0 0
      %1199 = vperm.xlu0 %1198, %v1177
      %v1200 = vpop.permute.xlu0 %1199
      %1203 = vset.pattern.permute.xlu0 0
      %1204 = vperm.xlu0 %1203, %v1178
      %v1205 = vpop.permute.xlu0 %1204
      %1208 = vset.pattern.permute.xlu0 0
      %1209 = vperm.xlu0 %1208, %v1179
      %v1210 = vpop.permute.xlu0 %1209
      %1213 = vset.pattern.permute.xlu0 0
      %1214 = vperm.xlu0 %1213, %v1180
      %v1215 = vpop.permute.xlu0 %1214
      %1218 = vset.pattern.permute.xlu0 0
      %1219 = vperm.xlu0 %1218, %v1181
      %v1220 = vpop.permute.xlu0 %1219
      %1223 = vset.pattern.permute.xlu0 0
      %1224 = vperm.xlu0 %1223, %v1182
      %v1225 = vpop.permute.xlu0 %1224
      %1228 = vset.pattern.permute.xlu0 0
      %1229 = vperm.xlu0 %1228, %v1183
      %v1230 = vpop.permute.xlu0 %1229
      %1233 = vset.pattern.permute.xlu0 0
      %1234 = vperm.xlu0 %1233, %v1184
      %v1235 = vpop.permute.xlu0 %1234
      %1238 = vset.pattern.permute.xlu0 0
      %1239 = vperm.xlu0 %1238, %v1185
      %v1240 = vpop.permute.xlu0 %1239
      %1243 = vset.pattern.permute.xlu0 0
      %1244 = vperm.xlu0 %1243, %v1186
      %v1245 = vpop.permute.xlu0 %1244
      %1248 = vset.pattern.permute.xlu0 0
      %1249 = vperm.xlu0 %1248, %v1187
      %v1250 = vpop.permute.xlu0 %1249
      %1253 = vset.pattern.permute.xlu0 0
      %1254 = vperm.xlu0 %1253, %v1188
      %v1255 = vpop.permute.xlu0 %1254
      %1258 = vset.pattern.permute.xlu0 0
      %1259 = vperm.xlu0 %1258, %v1189
      %v1260 = vpop.permute.xlu0 %1259
      %1263 = vset.pattern.permute.xlu0 0
      %1264 = vperm.xlu0 %1263, %v1190
      %v1265 = vpop.permute.xlu0 %1264
      %1268 = vset.pattern.permute.xlu0 0
      %1269 = vperm.xlu0 %1268, %v1191
      %v1270 = vpop.permute.xlu0 %1269
      %v1304 = vunpack.c.l.b16 %v1120
      %v1305 = vunpack.c.h.b16 %v1120
      %v1306 = vunpack.c.l.b16 %v1121
      %v1307 = vunpack.c.l.b16 %v1122
      %v1308 = vunpack.c.h.b16 %v1122
      %v1309 = vunpack.c.l.b16 %v1123
      %v1310 = vunpack.c.l.b16 %v1124
      %v1311 = vunpack.c.h.b16 %v1124
      %v1312 = vunpack.c.l.b16 %v1125
      %v1313 = vunpack.c.l.b16 %v1126
      %v1314 = vunpack.c.h.b16 %v1126
      %v1315 = vunpack.c.l.b16 %v1127
      %v1316 = vunpack.c.l.b16 %v1128
      %v1317 = vunpack.c.h.b16 %v1128
      %v1318 = vunpack.c.l.b16 %v1129
      %v1319 = vunpack.c.l.b16 %v1130
      %v1320 = vunpack.c.h.b16 %v1130
      %v1321 = vunpack.c.l.b16 %v1131
      %v1322 = vunpack.c.l.b16 %v1132
      %v1323 = vunpack.c.h.b16 %v1132
      %v1324 = vunpack.c.l.b16 %v1133
      %v1325 = vunpack.c.l.b16 %v1134
      %v1326 = vunpack.c.h.b16 %v1134
      %v1327 = vunpack.c.l.b16 %v1135
      %v1328 = vunpack.c.l.b16 %v1136
      %v1329 = vunpack.c.h.b16 %v1136
      %v1330 = vunpack.c.l.b16 %v1137
      %v1331 = vunpack.c.l.b16 %v1138
      %v1332 = vunpack.c.h.b16 %v1138
      %v1333 = vunpack.c.l.b16 %v1139
      %v1334 = vunpack.c.l.b16 %v1140
      %v1335 = vunpack.c.h.b16 %v1140
      %v1336 = vunpack.c.l.b16 %v1141
      %v1337 = vunpack.c.l.b16 %v1142
      %v1338 = vunpack.c.h.b16 %v1142
      %v1339 = vunpack.c.l.b16 %v1143
      %v1340 = vunpack.c.l.b16 %v1144
      %v1341 = vunpack.c.h.b16 %v1144
      %v1342 = vunpack.c.l.b16 %v1145
      %v1343 = vunpack.c.l.b16 %v1146
      %v1344 = vunpack.c.h.b16 %v1146
      %v1345 = vunpack.c.l.b16 %v1147
      %v1346 = vunpack.c.l.b16 %v1148
      %v1347 = vunpack.c.h.b16 %v1148
      %v1348 = vunpack.c.l.b16 %v1149
      %v1349 = vunpack.c.l.b16 %v1150
      %v1350 = vunpack.c.h.b16 %v1150
      %v1351 = vunpack.c.l.b16 %v1151
      %v1352 = vpack.c.b16 %v1307, %v1304
      %v1353 = vpack.c.b16 %v1308, %v1305
      %v1354 = vpack.c.b16 %v1309, %v1306
      %v1355 = vpack.c.b16 %v1313, %v1310
      %v1356 = vpack.c.b16 %v1314, %v1311
      %v1357 = vpack.c.b16 %v1315, %v1312
      %v1358 = vpack.c.b16 %v1319, %v1316
      %v1359 = vpack.c.b16 %v1320, %v1317
      %v1360 = vpack.c.b16 %v1321, %v1318
      %v1361 = vpack.c.b16 %v1325, %v1322
      %v1362 = vpack.c.b16 %v1326, %v1323
      %v1363 = vpack.c.b16 %v1327, %v1324
      %v1364 = vpack.c.b16 %v1331, %v1328
      %v1365 = vpack.c.b16 %v1332, %v1329
      %v1366 = vpack.c.b16 %v1333, %v1330
      %v1367 = vpack.c.b16 %v1337, %v1334
      %v1368 = vpack.c.b16 %v1338, %v1335
      %v1369 = vpack.c.b16 %v1339, %v1336
      %v1370 = vpack.c.b16 %v1343, %v1340
      %v1371 = vpack.c.b16 %v1344, %v1341
      %v1372 = vpack.c.b16 %v1345, %v1342
      %v1373 = vpack.c.b16 %v1349, %v1346
      %v1374 = vpack.c.b16 %v1350, %v1347
      %v1375 = vpack.c.b16 %v1351, %v1348
      %1400 = vmatprep.subr.bf16.mxu0 0
      %1401 = vmatpush1.bf16.msra.mxu0 %v1152
      %1402 = vmatprep.subr.bf16.mxu0 0
      %1403 = vmatpush1.bf16.msra.mxu0 %v1153
      %1404 = vmatprep.subr.bf16.mxu0 0
      %1405 = vmatpush1.bf16.msra.mxu0 %v1154
      %1406 = vmatprep.subr.bf16.mxu0 0
      %1407 = vmatpush1.bf16.msra.mxu0 %v1155
      %1408 = vmatprep.subr.bf16.mxu0 0
      %1409 = vmatpush1.bf16.msra.mxu0 %v1156
      %1410 = vmatprep.subr.bf16.mxu0 0
      %1411 = vmatpush1.bf16.msra.mxu0 %v1157
      %1412 = vmatprep.subr.bf16.mxu0 0
      %1413 = vmatpush1.bf16.msra.mxu0 %v1158
      %1414 = vmatprep.subr.bf16.mxu0 0
      %1415 = vmatpush1.bf16.msra.mxu0 %v1159
      %1416 = vmatprep.subr.bf16.mxu0 0
      %1417 = vmatpush1.bf16.msra.mxu0 %v1160
      %1418 = vmatprep.subr.bf16.mxu0 0
      %1419 = vmatpush1.bf16.msra.mxu0 %v1161
      %1420 = vmatprep.subr.bf16.mxu0 0
      %1421 = vmatpush1.bf16.msra.mxu0 %v1162
      %1422 = vmatprep.subr.bf16.mxu0 0
      %1423 = vmatpush1.bf16.msra.mxu0 %v1163
      %1424 = vmatprep.subr.bf16.mxu0 0
      %1425 = vmatpush1.bf16.msra.mxu0 %v1164
      %1426 = vmatprep.subr.bf16.mxu0 0
      %1427 = vmatpush1.bf16.msra.mxu0 %v1165
      %1428 = vmatprep.subr.bf16.mxu0 0
      %1429 = vmatpush1.bf16.msra.mxu0 %v1166
      %1430 = vmatprep.subr.bf16.mxu0 0
      %1431 = vmatpush1.bf16.msra.mxu0 %v1167
      %1432 = vmatprep.mubr.bf16.mxu0 %v1353
      %1433 = vmatmul.mubr.bf16.gmra.mrb[0].mxu0 %v1352
      %v1434 = vpop.f32.mrb[0].mxu0
      %v1435 = vadd.f32 %v1195, %v1434
      %v1436 = vpop.f32.mrb[0].mxu0
      %v1437 = vpop.f32.mrb[0].mxu0
      %v1438 = vadd.f32 %v1200, %v1437
      %v1439 = vpop.f32.mrb[0].mxu0
      %1440 = vmatprep.mubr.bf16.mxu0 %v1356
      %1441 = vmatmul.mubr.bf16.gmra.mrb[0].mxu0 %v1355
      %v1442 = vpop.f32.mrb[0].mxu0
      %v1443 = vadd.f32 %v1205, %v1442
      %v1444 = vpop.f32.mrb[0].mxu0
      %v1445 = vpop.f32.mrb[0].mxu0
      %v1446 = vadd.f32 %v1210, %v1445
      %v1447 = vpop.f32.mrb[0].mxu0
      %1448 = vmatprep.mubr.bf16.mxu0 %v1359
      %1449 = vmatmul.mubr.bf16.gmra.mrb[0].mxu0 %v1358
      %v1450 = vpop.f32.mrb[0].mxu0
      %v1451 = vadd.f32 %v1215, %v1450
      %v1452 = vpop.f32.mrb[0].mxu0
      %v1453 = vpop.f32.mrb[0].mxu0
      %v1454 = vadd.f32 %v1220, %v1453
      %v1455 = vpop.f32.mrb[0].mxu0
      %1456 = vmatprep.mubr.bf16.mxu0 %v1362
      %1457 = vmatmul.mubr.bf16.gmra.mrb[0].mxu0 %v1361
      %v1458 = vpop.f32.mrb[0].mxu0
      %v1459 = vadd.f32 %v1225, %v1458
      %v1460 = vpop.f32.mrb[0].mxu0
      %v1461 = vpop.f32.mrb[0].mxu0
      %v1462 = vadd.f32 %v1230, %v1461
      %v1463 = vpop.f32.mrb[0].mxu0
      %1464 = vmatprep.mubr.bf16.mxu0 %v1365
      %1465 = vmatmul.mubr.bf16.gmra.mrb[0].mxu0 %v1364
      %v1466 = vpop.f32.mrb[0].mxu0
      %v1467 = vadd.f32 %v1235, %v1466
      %v1468 = vpop.f32.mrb[0].mxu0
      %v1469 = vpop.f32.mrb[0].mxu0
      %v1470 = vadd.f32 %v1240, %v1469
      %v1471 = vpop.f32.mrb[0].mxu0
      %1472 = vmatprep.mubr.bf16.mxu0 %v1368
      %1473 = vmatmul.mubr.bf16.gmra.mrb[0].mxu0 %v1367
      %v1474 = vpop.f32.mrb[0].mxu0
      %v1475 = vadd.f32 %v1245, %v1474
      %v1476 = vpop.f32.mrb[0].mxu0
      %v1477 = vpop.f32.mrb[0].mxu0
      %v1478 = vadd.f32 %v1250, %v1477
      %v1479 = vpop.f32.mrb[0].mxu0
      %1480 = vmatprep.mubr.bf16.mxu0 %v1371
      %1481 = vmatmul.mubr.bf16.gmra.mrb[0].mxu0 %v1370
      %v1482 = vpop.f32.mrb[0].mxu0
      %v1483 = vadd.f32 %v1255, %v1482
      %v1484 = vpop.f32.mrb[0].mxu0
      %v1485 = vpop.f32.mrb[0].mxu0
      %v1486 = vadd.f32 %v1260, %v1485
      %v1487 = vpop.f32.mrb[0].mxu0
      %1488 = vmatprep.mubr.bf16.mxu0 %v1374
      %1489 = vmatmul.mubr.bf16.gmra.mrb[0].mxu0 %v1373
      %v1490 = vpop.f32.mrb[0].mxu0
      %v1491 = vadd.f32 %v1265, %v1490
      %v1492 = vpop.f32.mrb[0].mxu0
      %v1493 = vpop.f32.mrb[0].mxu0
      %v1494 = vadd.f32 %v1270, %v1493
      %v1495 = vpop.f32.mrb[0].mxu0
      %1496 = vdwg.mxu0
      %1497 = vmatprep.subr.bf16.mxu0 0
      %1498 = vmatpush1.bf16.msra.mxu0 %v1168
      %1499 = vmatprep.subr.bf16.mxu0 0
      %1500 = vmatpush1.bf16.msra.mxu0 %v1169
      %1501 = vmatprep.subr.bf16.mxu0 0
      %1502 = vmatpush1.bf16.msra.mxu0 %v1170
      %1503 = vmatprep.subr.bf16.mxu0 0
      %1504 = vmatpush1.bf16.msra.mxu0 %v1171
      %1505 = vmatprep.subr.bf16.mxu0 0
      %1506 = vmatpush1.bf16.msra.mxu0 %v1172
      %1507 = vmatprep.subr.bf16.mxu0 0
      %1508 = vmatpush1.bf16.msra.mxu0 %v1173
      %1509 = vmatprep.subr.bf16.mxu0 0
      %1510 = vmatpush1.bf16.msra.mxu0 %v1174
      %1511 = vmatprep.subr.bf16.mxu0 0
      %1512 = vmatpush1.bf16.msra.mxu0 %v1175
      %1513 = vmatprep.subr.bf16.mxu0 0
      %1514 = vmatpush1.bf16.msra.mxu0 0
      %1515 = vmatprep.subr.bf16.mxu0 0
      %1516 = vmatpush1.bf16.msra.mxu0 0
      %1517 = vmatprep.subr.bf16.mxu0 0
      %1518 = vmatpush1.bf16.msra.mxu0 0
      %1519 = vmatprep.subr.bf16.mxu0 0
      %1520 = vmatpush1.bf16.msra.mxu0 0
      %1521 = vmatprep.subr.bf16.mxu0 0
      %1522 = vmatpush1.bf16.msra.mxu0 0
      %1523 = vmatprep.subr.bf16.mxu0 0
      %1524 = vmatpush1.bf16.msra.mxu0 0
      %1525 = vmatprep.subr.bf16.mxu0 0
      %1526 = vmatpush1.bf16.msra.mxu0 0
      %1527 = vmatprep.subr.bf16.mxu0 0
      %1528 = vmatpush1.bf16.msra.mxu0 0
      %1529 = vmatprep.mubr.bf16.mxu0 0
      %1530 = vmatmul.mubr.bf16.gmra.mrb[0].mxu0 %v1354
      %v1531 = vpop.f32.mrb[0].mxu0
      %v1532 = vadd.f32 %v1435, %v1531
      %v1533 = vpop.f32.mrb[0].mxu0
      %v1534 = vpop.f32.mrb[0].mxu0
      %v1535 = vadd.f32 %v1438, %v1534
      %v1536 = vpop.f32.mrb[0].mxu0
      %1537 = vmatprep.mubr.bf16.mxu0 0
      %1538 = vmatmul.mubr.bf16.gmra.mrb[0].mxu0 %v1357
      %v1539 = vpop.f32.mrb[0].mxu0
      %v1540 = vadd.f32 %v1443, %v1539
      %v1541 = vpop.f32.mrb[0].mxu0
      %v1542 = vpop.f32.mrb[0].mxu0
      %v1543 = vadd.f32 %v1446, %v1542
      %v1544 = vpop.f32.mrb[0].mxu0
      %1545 = vmatprep.mubr.bf16.mxu0 0
      %1546 = vmatmul.mubr.bf16.gmra.mrb[0].mxu0 %v1360
      %v1547 = vpop.f32.mrb[0].mxu0
      %v1548 = vadd.f32 %v1451, %v1547
      %v1549 = vpop.f32.mrb[0].mxu0
      %v1550 = vpop.f32.mrb[0].mxu0
      %v1551 = vadd.f32 %v1454, %v1550
      %v1552 = vpop.f32.mrb[0].mxu0
      %1553 = vmatprep.mubr.bf16.mxu0 0
      %1554 = vmatmul.mubr.bf16.gmra.mrb[0].mxu0 %v1363
      %v1555 = vpop.f32.mrb[0].mxu0
      %v1556 = vadd.f32 %v1459, %v1555
      %v1557 = vpop.f32.mrb[0].mxu0
      %v1558 = vpop.f32.mrb[0].mxu0
      %v1559 = vadd.f32 %v1462, %v1558
      %v1560 = vpop.f32.mrb[0].mxu0
      %1561 = vmatprep.mubr.bf16.mxu0 0
      %1562 = vmatmul.mubr.bf16.gmra.mrb[0].mxu0 %v1366
      %v1563 = vpop.f32.mrb[0].mxu0
      %v1564 = vadd.f32 %v1467, %v1563
      %v1565 = vpop.f32.mrb[0].mxu0
      %v1566 = vpop.f32.mrb[0].mxu0
      %v1567 = vadd.f32 %v1470, %v1566
      %v1568 = vpop.f32.mrb[0].mxu0
      %1569 = vmatprep.mubr.bf16.mxu0 0
      %1570 = vmatmul.mubr.bf16.gmra.mrb[0].mxu0 %v1369
      %v1571 = vpop.f32.mrb[0].mxu0
      %v1572 = vadd.f32 %v1475, %v1571
      %v1573 = vpop.f32.mrb[0].mxu0
      %v1574 = vpop.f32.mrb[0].mxu0
      %v1575 = vadd.f32 %v1478, %v1574
      %v1576 = vpop.f32.mrb[0].mxu0
      %1577 = vmatprep.mubr.bf16.mxu0 0
      %1578 = vmatmul.mubr.bf16.gmra.mrb[0].mxu0 %v1372
      %v1579 = vpop.f32.mrb[0].mxu0
      %v1580 = vadd.f32 %v1483, %v1579
      %v1581 = vpop.f32.mrb[0].mxu0
      %v1582 = vpop.f32.mrb[0].mxu0
      %v1583 = vadd.f32 %v1486, %v1582
      %v1584 = vpop.f32.mrb[0].mxu0
      %1585 = vmatprep.mubr.bf16.mxu0 0
      %1586 = vmatmul.mubr.bf16.gmra.mrb[0].mxu0 %v1375
      %v1587 = vpop.f32.mrb[0].mxu0
      %v1588 = vadd.f32 %v1491, %v1587
      %v1589 = vpop.f32.mrb[0].mxu0
      %v1590 = vpop.f32.mrb[0].mxu0
      %v1591 = vadd.f32 %v1494, %v1590
      %v1592 = vpop.f32.mrb[0].mxu0
      %1593 = vdwg.mxu0
      %v1594 = vtanh.pop %v1532
      %v1595 = vtanh.pop %v1535
      %v1596 = vtanh.pop %v1540
      %v1597 = vtanh.pop %v1543
      %v1598 = vtanh.pop %v1548
      %v1599 = vtanh.pop %v1551
      %v1600 = vtanh.pop %v1556
      %v1601 = vtanh.pop %v1559
      %v1602 = vtanh.pop %v1564
      %v1603 = vtanh.pop %v1567
      %v1604 = vtanh.pop %v1572
      %v1605 = vtanh.pop %v1575
      %v1606 = vtanh.pop %v1580
      %v1607 = vtanh.pop %v1583
      %v1608 = vtanh.pop %v1588
      %v1609 = vtanh.pop %v1591
      %v1610 = vld [vmem:[%s5] sm:$0x7]
      %v1611 = vpack.c.bf16 %v1595, %v1594
      %v1612 = vpack.c.bf16 %v1597, %v1596
      %v1613 = vpack.c.bf16 %v1599, %v1598
      %v1614 = vpack.c.bf16 %v1601, %v1600
      %v1615 = vpack.c.bf16 %v1603, %v1602
      %v1616 = vpack.c.bf16 %v1605, %v1604
      %v1617 = vpack.c.bf16 %v1607, %v1606
      %v1618 = vpack.c.bf16 %v1609, %v1608
      %v1619 = vld [vmem:[%s6] sm:$0x1f]
      %1621 = vset.pattern.permute.xlu0 0
      %1622 = vperm.xlu0 %1621, %v1619
      %v1623 = vpop.permute.xlu0 %1622
      %1625 = vmatprep.subr.bf16.mxu0 0
      %1626 = vmatpush1.bf16.msra.mxu0 %v1611
      %1627 = vmatprep.subr.bf16.mxu0 0
      %1628 = vmatpush1.bf16.msra.mxu0 %v1612
      %1629 = vmatprep.subr.bf16.mxu0 0
      %1630 = vmatpush1.bf16.msra.mxu0 %v1613
      %1631 = vmatprep.subr.bf16.mxu0 0
      %1632 = vmatpush1.bf16.msra.mxu0 %v1614
      %1633 = vmatprep.subr.bf16.mxu0 0
      %1634 = vmatpush1.bf16.msra.mxu0 %v1615
      %1635 = vmatprep.subr.bf16.mxu0 0
      %1636 = vmatpush1.bf16.msra.mxu0 %v1616
      %1637 = vmatprep.subr.bf16.mxu0 0
      %1638 = vmatpush1.bf16.msra.mxu0 %v1617
      %1639 = vmatprep.subr.bf16.mxu0 0
      %1640 = vmatpush1.bf16.msra.mxu0 %v1618
      %1641 = vmatprep.subr.bf16.mxu0 0
      %1642 = vmatpush1.bf16.msra.mxu0 0
      %1643 = vmatprep.subr.bf16.mxu0 0
      %1644 = vmatpush1.bf16.msra.mxu0 0
      %1645 = vmatprep.subr.bf16.mxu0 0
      %1646 = vmatpush1.bf16.msra.mxu0 0
      %1647 = vmatprep.subr.bf16.mxu0 0
      %1648 = vmatpush1.bf16.msra.mxu0 0
      %1649 = vmatprep.subr.bf16.mxu0 0
      %1650 = vmatpush1.bf16.msra.mxu0 0
      %1651 = vmatprep.subr.bf16.mxu0 0
      %1652 = vmatpush1.bf16.msra.mxu0 0
      %1653 = vmatprep.subr.bf16.mxu0 0
      %1654 = vmatpush1.bf16.msra.mxu0 0
      %1655 = vmatprep.subr.bf16.mxu0 0
      %1656 = vmatpush1.bf16.msra.mxu0 0
      %1657 = vmatprep.mubr.bf16.mxu0 0
      %1658 = vmatmul.mubr.bf16.gmra.mrb[0].mxu0 %v1610
      %v1659 = vpop.f32.mrb[0].mxu0
      %v1660 = vadd.f32 %v1623, %v1659
      %v1661 = vpop.f32.mrb[0].mxu0
      %v1662 = vpop.f32.mrb[0].mxu0
      %v1663 = vpop.f32.mrb[0].mxu0
      %1664 = vdwg.mxu0
      %vm1665 = vcmask 520192
      %1666 = vst.msk [vmem:[%s307] sm:$0x1f] %vm1665, %v1660
      %p1667 = scmp.lt.s32.totalorder %s22, 1
      %s1668 = scalar_select %p1667, %s22, 1
      %p1669 = scmp.lt.s32.totalorder %s23, 0
      %s1670 = scalar_select %p1669, %s23, 0
      %s1671 = sadd.s32 %s1670, %s1668
      %s1672 = smul.addr %s1671, 8
      %s1673 = scalar_lea.vmem %s7, %s1672
      // Predicated region
      $region49: #{cnn_1d_forward.1} parent=47 // pred_check
        %p1674 = pneg %p204
      $region50: #{cnn_1d_forward.1} parent=47 // pred_check_branch
        %1676 = sbr.rel (%p1674) target = $region52
      $region51: #{cnn_1d_forward.1} parent=47 // pred_region
        _
      $region52: #{cnn_1d_forward.1} parent=47 // pred_fallthru
        _
    $region48: #{cnn_1d_forward.1} parent=5 // pred_fallthru
      _
    %p1677 = scmp.le.s32.totalorder 2, %s13
    // Predicated region
    $region53: #{cnn_1d_forward.1} parent=5 // pred_check
      %p1678 = pneg %p1677
    $region54: #{cnn_1d_forward.1} parent=5 // pred_check_branch
      %1680 = sbr.rel (%p1678) target = $region56
    $region55: #{cnn_1d_forward.1} parent=5 // pred_region
      %s1681 = ssub.s32 %s13, 2
      // Predicated region
      $region57: #{cnn_1d_forward.1} parent=55 // pred_check
        %p1682 = pneg %p210
      $region58: #{cnn_1d_forward.1} parent=55 // pred_check_branch
        %1684 = sbr.rel (%p1682) target = $region60
      $region59: #{cnn_1d_forward.1} parent=55 // pred_region
        %p1685 = scmp.lt.s32.totalorder %s24, 1
        %s1686 = scalar_select %p1685, %s24, 1
        %p1687 = scmp.lt.s32.totalorder %s25, 0
        %s1688 = scalar_select %p1687, %s25, 0
        %s1689 = sadd.s32 %s1688, %s1686
        %s1690 = smul.addr %s1689, 8
        %s1691 = scalar_lea.vmem %s7, %s1690
      $region60: #{cnn_1d_forward.1} parent=55 // pred_fallthru
        _
    $region56: #{cnn_1d_forward.1} parent=5 // pred_fallthru
      _
  $region6: #{cnn_1d_forward.1} parent=0 // loop_footer
    %s17 = sadd.s32 1, %s13
  $region7: #{cnn_1d_forward.1} parent=0 // loop_footer_branch
    %12 = sbr.rel target = $region3
  $region8: #{cnn_1d_forward.1} parent=0 // loop_exit
    _

</llo_original>
